<compile_context>
chip_gen: v7x
topology: tpu7x:2x2x1
jax: 0.10.0
libtpu: 0.0.40
codegen_flags: <defaults>
</compile_context>

<pallas_src>
import jax
import jax.numpy as jnp
from jax.experimental import pallas as pl
from jax.experimental.pallas import tpu as pltpu


LANE = 128          # lane-dense feature padding / node-row padding granule
EPS_SQ = 1e-24      # matches F.normalize's max(||x||, 1e-12) clamp (squared)


# ----------------------------- Pallas kernel --------------------------------

def _gnn_stack_kernel(adj_ref, x_ref, w_ref, b_ref, out_ref):
    """Fused GNNStackStage: grid axis = layer index; out_ref carries x across layers.

    adj_ref: (Np, Np)        bf16  GCN-normalized adjacency (resident across layers)
    x_ref:   (Np, 128)       f32   zero-padded input node features (read at layer 0)
    w_ref:   (L, 128, 128)   bf16  zero-padded weight stack (resident)
    b_ref:   (L, 1, 128)     f32   zero-padded bias stack (resident)
    out_ref: (Np, 128)       f32   running node features / final output (resident)
    """
    layer = pl.program_id(0)
    n_layers = pl.num_programs(0)

    @pl.when(layer == 0)
    def _():
        out_ref[...] = x_ref[...]

    x_bf16 = out_ref[...].astype(jnp.bfloat16)

    # Feature transform: X @ W[layer]   (bf16 x bf16, f32 accumulation on MXU).
    xw = jnp.dot(x_bf16, w_ref[layer], preferred_element_type=jnp.float32)

    # Aggregation: A_hat @ (X W)        (bf16 x bf16, f32 accumulation on MXU).
    h = jnp.dot(adj_ref[...], xw.astype(jnp.bfloat16),
                preferred_element_type=jnp.float32)

    h = h + b_ref[layer]                   # bias (zeros by config, kept for semantics)
    h = jnp.maximum(h, 0.0)                # ReLU (has_act=True)

    # Row L2-norm: h * rsqrt(max(sum h^2, eps^2)); padded zero columns are inert.
    ssq = jnp.sum(h * h, axis=-1, keepdims=True)
    h = h * jax.lax.rsqrt(jnp.maximum(ssq, EPS_SQ))

    out_ref[...] = h

    @pl.when(layer == n_layers - 1)
    def _():
        # Final F.normalize(batch.x) from GNNStackStage.forward (near-identity after
        # the per-layer norm; applied for exact reference semantics, free when fused).
        ssq2 = jnp.sum(h * h, axis=-1, keepdims=True)
        out_ref[...] = h * jax.lax.rsqrt(jnp.maximum(ssq2, EPS_SQ))


# ------------------------------ JAX wrapper ----------------------------------

def _vmem_limit_bytes():
    """~75% of this generation's physical VMEM (96 MiB v5e/v6e, 48 MiB v7x)."""
    try:
        return int(pltpu.get_tpu_info().vmem_capacity_bytes * 3 // 4)
    except Exception:
        return 48 * 1024 * 1024


def _pallas_forward(adj_p, x_p, w_stack, b_stack, *, single_buffer):
    num_layers = w_stack.shape[0]
    n_pad, d_pad = x_p.shape
    # Grid-invariant operands: request single buffering (no pipelining needed).
    resident = dict(pipeline_mode=pl.Buffered(1)) if single_buffer else {}

    return pl.pallas_call(
        _gnn_stack_kernel,
        out_shape=jax.ShapeDtypeStruct((n_pad, d_pad), jnp.float32),
        grid_spec=pltpu.PrefetchScalarGridSpec(
            num_scalar_prefetch=0,
            grid=(num_layers,),
            in_specs=[
                pl.BlockSpec((n_pad, n_pad), lambda l: (0, 0), **resident),        # adj
                pl.BlockSpec((n_pad, d_pad), lambda l: (0, 0), **resident),        # x0
                pl.BlockSpec((num_layers, d_pad, d_pad),
                             lambda l: (0, 0, 0), **resident),                     # W stack
                pl.BlockSpec((num_layers, 1, d_pad),
                             lambda l: (0, 0, 0), **resident),                     # b stack
            ],
            out_specs=pl.BlockSpec((n_pad, d_pad), lambda l: (0, 0), **resident),  # carry/out
        ),
        compiler_params=pltpu.CompilerParams(
            dimension_semantics=("arbitrary",),          # layer carry lives in out_ref
            vmem_limit_bytes=_vmem_limit_bytes(),
        ),
    )(adj_p, x_p, w_stack, b_stack)


def gnn_stack_stage_forward(x, adj, weights, biases):
    """GNNStackStage.forward (stage_type='stack', l2norm=True), fully fused."""
    num_layers = len(weights)
    n, d_in = x.shape
    d_out = weights[-1].shape[1]

    n_pad = -(-n // LANE) * LANE           # multiple of 128: lane-dense adj, full MXU K-tiles
    d_pad = LANE                           # lane-dense feature dim

    # Zero-pad everything; padded rows/cols are inert (zero adjacency, zero weights/bias).
    x_p = jnp.zeros((n_pad, d_pad), jnp.float32).at[:n, :d_in].set(x)
    adj_p = jnp.zeros((n_pad, n_pad), jnp.float32).at[:n, :n].set(adj)
    adj_p = adj_p.astype(jnp.bfloat16)     # the only O(N^2) operand -> bf16 MXU input

    w_stack = jnp.zeros((num_layers, d_pad, d_pad), jnp.float32)
    b_stack = jnp.zeros((num_layers, 1, d_pad), jnp.float32)
    for i, (w, b) in enumerate(zip(weights, biases)):
        w_stack = w_stack.at[i, : w.shape[0], : w.shape[1]].set(w)
        b_stack = b_stack.at[i, :, : b.shape[-1]].set(b.reshape(1, -1))
    w_stack = w_stack.astype(jnp.bfloat16)

    try:
        out = _pallas_forward(adj_p, x_p, w_stack, b_stack, single_buffer=True)
        out = jax.block_until_ready(out)
    except Exception:
        # Fallback for jax builds that reject pl.Buffered(1) single-buffering.
        out = _pallas_forward(adj_p, x_p, w_stack, b_stack, single_buffer=False)

    return out[:n, :d_out]


# --------------------------- pure-JAX reference -------------------------------

def reference_forward(x, adj, weights, biases):
    h = x
    for w, b in zip(weights, biases):
        h = adj @ (h @ w) + b.reshape(1, -1)
        h = jnp.maximum(h, 0.0)
        nrm = jnp.maximum(jnp.linalg.norm(h, axis=-1, keepdims=True), 1e-12)
        h = h / nrm
    nrm = jnp.maximum(jnp.linalg.norm(h, axis=-1, keepdims=True), 1e-12)
    return h / nrm


# ------------------------- graph / parameter setup ---------------------------

def build_normalized_adjacency(edge_index, num_nodes):
    """Dense GCN-normalized adjacency with self-loops (GeneralConvLayer.norm)."""
    src, dst = edge_index[0], edge_index[1]
    loop = jnp.arange(num_nodes, dtype=src.dtype)
    src = jnp.concatenate([src, loop])
    dst = jnp.concatenate([dst, loop])
    ew = jnp.ones(src.shape[0], dtype=jnp.float32)
    deg = jnp.zeros((num_nodes,), jnp.float32).at[src].add(ew)
    dinv = jnp.where(deg > 0, jax.lax.rsqrt(deg), 0.0)
    norm = dinv[src] * ew * dinv[dst]
    # message flows src -> dst, aggregated at dst:  out[dst] += norm * x[src]
    adj = jnp.zeros((num_nodes, num_nodes), jnp.float32).at[dst, src].add(norm)
    return adj


def glorot(key, shape):
    fan_in, fan_out = shape
    lim = (6.0 / (fan_in + fan_out)) ** 0.5
    return jax.random.uniform(key, shape, jnp.float32, -lim, lim)


if __name__ == "__main__":
    NUM_NODES = 128
    DIM_IN = 32
    DIM_OUT = 64
    NUM_LAYERS = 3

    key = jax.random.PRNGKey(0)
    k_x, k_e, k_w = jax.random.split(key, 3)

    # node features
    x = jax.random.normal(k_x, (NUM_NODES, DIM_IN), jnp.float32)

    # deterministic synthetic undirected graph: ring + a few random chords
    ring_src = jnp.arange(NUM_NODES, dtype=jnp.int32)
    ring_dst = (ring_src + 1) % NUM_NODES
    rnd = jax.random.randint(k_e, (2, 64), 0, NUM_NODES, dtype=jnp.int32)
    src = jnp.concatenate([ring_src, ring_dst, rnd[0], rnd[1]])
    dst = jnp.concatenate([ring_dst, ring_src, rnd[1], rnd[0]])
    edge_index = jnp.stack([src, dst])
    adj = build_normalized_adjacency(edge_index, NUM_NODES)

    # GNNStackStage.__init__ parameter shapes (stage_type != 'skipconcat'):
    #   layer0: W (DIM_IN, DIM_OUT); layer i>0: W (DIM_OUT, DIM_OUT); bias zeros (DIM_OUT,)
    weights, biases = [], []
    wkeys = jax.random.split(k_w, NUM_LAYERS)
    for i in range(NUM_LAYERS):
        d_in = DIM_IN if i == 0 else DIM_OUT
        weights.append(glorot(wkeys[i], (d_in, DIM_OUT)))
        biases.append(jnp.zeros((1, DIM_OUT), jnp.float32))

    out = gnn_stack_stage_forward(x, adj, weights, biases)
    out = jax.block_until_ready(out)

    assert out.shape == (NUM_NODES, DIM_OUT) and out.dtype == jnp.float32
    assert bool(jnp.all(jnp.isfinite(out)))

    # bf16-MXU kernel vs. f32 reference: expect ~1e-3 deviation, assert loosely.
    ref = reference_forward(x, adj, weights, biases)
    max_err = float(jnp.max(jnp.abs(out - ref)))
    assert max_err < 5e-2, f"max abs error {max_err} vs f32 reference"

    print("KERNEL_OK")
</pallas_src>

<mosaic_0001>
module attributes {stable_mosaic.version = 11 : i64} {
  func.func @_gnn_stack_kernel(%arg0: i32, %arg1: memref<128x128xbf16, #tpu.memory_space<vmem>>, %arg2: memref<128x128xf32, #tpu.memory_space<vmem>>, %arg3: memref<3x128x128xbf16, #tpu.memory_space<vmem>>, %arg4: memref<3x1x128xf32, #tpu.memory_space<vmem>>, %arg5: memref<128x128xf32, #tpu.memory_space<vmem>>) attributes {dimension_semantics = [#tpu.dimension_semantics<arbitrary>], iteration_bounds = array<i64: 3>, scalar_prefetch = 0 : i64, scratch_operands = 0 : i64, tpu.core_type = #tpu.core_type<tc>, window_params = [{pipeline_mode = #tpu.pipeline_mode<synchronous>, transform_indices = @transform_0, window_bounds = array<i64: 128, 128>}, {pipeline_mode = #tpu.pipeline_mode<synchronous>, transform_indices = @transform_1, window_bounds = array<i64: 128, 128>}, {pipeline_mode = #tpu.pipeline_mode<synchronous>, transform_indices = @transform_2, window_bounds = array<i64: 3, 128, 128>}, {pipeline_mode = #tpu.pipeline_mode<synchronous>, transform_indices = @transform_3, window_bounds = array<i64: 3, 1, 128>}, {pipeline_mode = #tpu.pipeline_mode<synchronous>, transform_indices = @transform_4, window_bounds = array<i64: 128, 128>}]} {
    %c0_i32 = arith.constant 0 : i32
    %0 = arith.cmpi eq, %arg0, %c0_i32 : i32
    %1 = arith.extui %0 : i1 to i32
    %c0_i32_0 = arith.constant 0 : i32
    %2 = arith.cmpi ne, %1, %c0_i32_0 : i32
    scf.if %2 {
      %c0_15 = arith.constant 0 : index
      %c0_16 = arith.constant 0 : index
      %31 = vector.load %arg2[%c0_15, %c0_16] : memref<128x128xf32, #tpu.memory_space<vmem>>, vector<128x128xf32>
      %c0_17 = arith.constant 0 : index
      %c0_18 = arith.constant 0 : index
      %32 = vector.load %arg5[%c0_17, %c0_18] : memref<128x128xf32, #tpu.memory_space<vmem>>, vector<128x128xf32>
      tpu.vector_store %arg5[%c0_17, %c0_18], %31 {strides = array<i32>} : memref<128x128xf32, #tpu.memory_space<vmem>>, vector<128x128xf32>,
    } else {
    }
    %c0 = arith.constant 0 : index
    %c0_1 = arith.constant 0 : index
    %3 = vector.load %arg5[%c0, %c0_1] : memref<128x128xf32, #tpu.memory_space<vmem>>, vector<128x128xf32>
    %4 = arith.truncf %3 : vector<128x128xf32> to vector<128x128xbf16>
    %5 = arith.index_cast %arg0 : i32 to index
    %c0_2 = arith.constant 0 : index
    %c0_3 = arith.constant 0 : index
    %6 = vector.load %arg3[%5, %c0_2, %c0_3] : memref<3x128x128xbf16, #tpu.memory_space<vmem>>, vector<1x128x128xbf16>
    %7 = vector.shape_cast %6 : vector<1x128x128xbf16> to vector<128x128xbf16>
    %cst = arith.constant dense<0.000000e+00> : vector<128x128xf32>
    %8 = tpu.matmul %4, %7, %cst {dimension_numbers = #tpu.dot_dimension_numbers<[1], [0], [0], [1], [0, 0, 1, 1], [], []>} : vector<128x128xbf16>, vector<128x128xbf16>, vector<128x128xf32> -> vector<128x128xf32>
    %c0_4 = arith.constant 0 : index
    %c0_5 = arith.constant 0 : index
    %9 = vector.load %arg1[%c0_4, %c0_5] : memref<128x128xbf16, #tpu.memory_space<vmem>>, vector<128x128xbf16>
    %10 = arith.truncf %8 : vector<128x128xf32> to vector<128x128xbf16>
    %cst_6 = arith.constant dense<0.000000e+00> : vector<128x128xf32>
    %11 = tpu.matmul %9, %10, %cst_6 {dimension_numbers = #tpu.dot_dimension_numbers<[1], [0], [0], [1], [0, 0, 1, 1], [], []>} : vector<128x128xbf16>, vector<128x128xbf16>, vector<128x128xf32> -> vector<128x128xf32>
    %12 = arith.index_cast %arg0 : i32 to index
    %c0_7 = arith.constant 0 : index
    %c0_8 = arith.constant 0 : index
    %13 = vector.load %arg4[%12, %c0_7, %c0_8] : memref<3x1x128xf32, #tpu.memory_space<vmem>>, vector<1x1x128xf32>
    %14 = vector.shape_cast %13 : vector<1x1x128xf32> to vector<1x128xf32>
    %15 = vector.broadcast %14 : vector<1x128xf32> to vector<128x128xf32>
    %16 = arith.addf %11, %15 : vector<128x128xf32>
    %cst_9 = arith.constant 0.000000e+00 : f32
    %17 = vector.broadcast %cst_9 : f32 to vector<128x128xf32>
    %18 = arith.maximumf %16, %17 : vector<128x128xf32>
    %19 = arith.mulf %18, %18 : vector<128x128xf32>
    %cst_10 = arith.constant dense<0.000000e+00> : vector<128xf32>
    %20 = vector.multi_reduction <add>, %19, %cst_10 [1] : vector<128x128xf32> to vector<128xf32>
    %21 = vector.shape_cast %20 : vector<128xf32> to vector<128x1xf32>
    %cst_11 = arith.constant 1.000000e-24 : f32
    %22 = vector.broadcast %cst_11 : f32 to vector<128x1xf32>
    %23 = arith.maximumf %21, %22 : vector<128x1xf32>
    %24 = math.rsqrt %23 : vector<128x1xf32>
    %25 = vector.broadcast %24 : vector<128x1xf32> to vector<128x128xf32>
    %26 = arith.mulf %18, %25 : vector<128x128xf32>
    %c0_12 = arith.constant 0 : index
    %c0_13 = arith.constant 0 : index
    %27 = vector.load %arg5[%c0_12, %c0_13] : memref<128x128xf32, #tpu.memory_space<vmem>>, vector<128x128xf32>
    tpu.vector_store %arg5[%c0_12, %c0_13], %26 {strides = array<i32>} : memref<128x128xf32, #tpu.memory_space<vmem>>, vector<128x128xf32>,
    %c2_i32 = arith.constant 2 : i32
    %28 = arith.cmpi eq, %arg0, %c2_i32 : i32
    %29 = arith.extui %28 : i1 to i32
    %c0_i32_14 = arith.constant 0 : i32
    %30 = arith.cmpi ne, %29, %c0_i32_14 : i32
    scf.if %30 {
      %31 = arith.mulf %26, %26 : vector<128x128xf32>
      %cst_15 = arith.constant dense<0.000000e+00> : vector<128xf32>
      %32 = vector.multi_reduction <add>, %31, %cst_15 [1] : vector<128x128xf32> to vector<128xf32>
      %33 = vector.shape_cast %32 : vector<128xf32> to vector<128x1xf32>
      %cst_16 = arith.constant 1.000000e-24 : f32
      %34 = vector.broadcast %cst_16 : f32 to vector<128x1xf32>
      %35 = arith.maximumf %33, %34 : vector<128x1xf32>
      %36 = math.rsqrt %35 : vector<128x1xf32>
      %37 = vector.broadcast %36 : vector<128x1xf32> to vector<128x128xf32>
      %38 = arith.mulf %26, %37 : vector<128x128xf32>
      %c0_17 = arith.constant 0 : index
      %c0_18 = arith.constant 0 : index
      %39 = vector.load %arg5[%c0_17, %c0_18] : memref<128x128xf32, #tpu.memory_space<vmem>>, vector<128x128xf32>
      tpu.vector_store %arg5[%c0_17, %c0_18], %38 {strides = array<i32>} : memref<128x128xf32, #tpu.memory_space<vmem>>, vector<128x128xf32>,
    } else {
    }
    return
  }
  func.func @transform_0(%arg0: i32) -> (i32, i32) {
    %c0_i32 = arith.constant 0 : i32
    %c0_i32_0 = arith.constant 0 : i32
    %c0_i32_1 = arith.constant 0 : i32
    return %c0_i32, %c0_i32_0 : i32, i32
  }
  func.func @transform_1(%arg0: i32) -> (i32, i32) {
    %c0_i32 = arith.constant 0 : i32
    %c0_i32_0 = arith.constant 0 : i32
    %c0_i32_1 = arith.constant 0 : i32
    return %c0_i32, %c0_i32_0 : i32, i32
  }
  func.func @transform_2(%arg0: i32) -> (i32, i32, i32) {
    %c0_i32 = arith.constant 0 : i32
    %c0_i32_0 = arith.constant 0 : i32
    %c0_i32_1 = arith.constant 0 : i32
    %c0_i32_2 = arith.constant 0 : i32
    return %c0_i32, %c0_i32_0, %c0_i32_1 : i32, i32, i32
  }
  func.func @transform_3(%arg0: i32) -> (i32, i32, i32) {
    %c0_i32 = arith.constant 0 : i32
    %c0_i32_0 = arith.constant 0 : i32
    %c0_i32_1 = arith.constant 0 : i32
    %c0_i32_2 = arith.constant 0 : i32
    return %c0_i32, %c0_i32_0, %c0_i32_1 : i32, i32, i32
  }
  func.func @transform_4(%arg0: i32) -> (i32, i32) {
    %c0_i32 = arith.constant 0 : i32
    %c0_i32_0 = arith.constant 0 : i32
    %c0_i32_1 = arith.constant 0 : i32
    return %c0_i32, %c0_i32_0 : i32, i32
  }
}

module attributes {stable_mosaic.version = 11 : i64} {
  func.func @_gnn_stack_kernel(%arg0: i32, %arg1: memref<128x128xbf16, #tpu.memory_space<vmem>>, %arg2: memref<128x128xf32, #tpu.memory_space<vmem>>, %arg3: memref<3x128x128xbf16, #tpu.memory_space<vmem>>, %arg4: memref<3x1x128xf32, #tpu.memory_space<vmem>>, %arg5: memref<128x128xf32, #tpu.memory_space<vmem>>) attributes {dimension_semantics = [#tpu.dimension_semantics<arbitrary>], iteration_bounds = array<i64: 3>, scalar_prefetch = 0 : i64, scratch_operands = 0 : i64, tpu.core_type = #tpu.core_type<tc>, window_params = [{pipeline_mode = #tpu.pipeline_mode<synchronous>, transform_indices = @transform_0, window_bounds = array<i64: 128, 128>}, {pipeline_mode = #tpu.pipeline_mode<synchronous>, transform_indices = @transform_1, window_bounds = array<i64: 128, 128>}, {pipeline_mode = #tpu.pipeline_mode<synchronous>, transform_indices = @transform_2, window_bounds = array<i64: 3, 128, 128>}, {pipeline_mode = #tpu.pipeline_mode<synchronous>, transform_indices = @transform_3, window_bounds = array<i64: 3, 1, 128>}, {pipeline_mode = #tpu.pipeline_mode<synchronous>, transform_indices = @transform_4, window_bounds = array<i64: 128, 128>}]} {
    %c0_i32 = arith.constant 0 : i32
    %0 = arith.cmpi eq, %arg0, %c0_i32 : i32
    %1 = arith.extui %0 : i1 to i32
    %c0_i32_0 = arith.constant 0 : i32
    %2 = arith.cmpi ne, %1, %c0_i32_0 : i32
    scf.if %2 {
      %c0_15 = arith.constant 0 : index
      %c0_16 = arith.constant 0 : index
      %31 = vector.load %arg2[%c0_15, %c0_16] : memref<128x128xf32, #tpu.memory_space<vmem>>, vector<128x128xf32>
      %c0_17 = arith.constant 0 : index
      %c0_18 = arith.constant 0 : index
      %32 = vector.load %arg5[%c0_17, %c0_18] : memref<128x128xf32, #tpu.memory_space<vmem>>, vector<128x128xf32>
      tpu.vector_store %arg5[%c0_17, %c0_18], %31 {strides = array<i32>} : memref<128x128xf32, #tpu.memory_space<vmem>>, vector<128x128xf32>,
    } else {
    }
    %c0 = arith.constant 0 : index
    %c0_1 = arith.constant 0 : index
    %3 = vector.load %arg5[%c0, %c0_1] : memref<128x128xf32, #tpu.memory_space<vmem>>, vector<128x128xf32>
    %4 = arith.truncf %3 : vector<128x128xf32> to vector<128x128xbf16>
    %5 = arith.index_cast %arg0 : i32 to index
    %c0_2 = arith.constant 0 : index
    %c0_3 = arith.constant 0 : index
    %6 = vector.load %arg3[%5, %c0_2, %c0_3] : memref<3x128x128xbf16, #tpu.memory_space<vmem>>, vector<1x128x128xbf16>
    %7 = vector.shape_cast %6 : vector<1x128x128xbf16> to vector<128x128xbf16>
    %cst = arith.constant dense<0.000000e+00> : vector<128x128xf32>
    %8 = tpu.matmul %4, %7, %cst {dimension_numbers = #tpu.dot_dimension_numbers<[1], [0], [0], [1], [0, 0, 1, 1], [], []>} : vector<128x128xbf16>, vector<128x128xbf16>, vector<128x128xf32> -> vector<128x128xf32>
    %c0_4 = arith.constant 0 : index
    %c0_5 = arith.constant 0 : index
    %9 = vector.load %arg1[%c0_4, %c0_5] : memref<128x128xbf16, #tpu.memory_space<vmem>>, vector<128x128xbf16>
    %10 = arith.truncf %8 : vector<128x128xf32> to vector<128x128xbf16>
    %cst_6 = arith.constant dense<0.000000e+00> : vector<128x128xf32>
    %11 = tpu.matmul %9, %10, %cst_6 {dimension_numbers = #tpu.dot_dimension_numbers<[1], [0], [0], [1], [0, 0, 1, 1], [], []>} : vector<128x128xbf16>, vector<128x128xbf16>, vector<128x128xf32> -> vector<128x128xf32>
    %12 = arith.index_cast %arg0 : i32 to index
    %c0_7 = arith.constant 0 : index
    %c0_8 = arith.constant 0 : index
    %13 = vector.load %arg4[%12, %c0_7, %c0_8] : memref<3x1x128xf32, #tpu.memory_space<vmem>>, vector<1x1x128xf32>
    %14 = vector.shape_cast %13 : vector<1x1x128xf32> to vector<1x128xf32>
    %15 = vector.broadcast %14 : vector<1x128xf32> to vector<128x128xf32>
    %16 = arith.addf %11, %15 : vector<128x128xf32>
    %cst_9 = arith.constant 0.000000e+00 : f32
    %17 = vector.broadcast %cst_9 : f32 to vector<128x128xf32>
    %18 = arith.maximumf %16, %17 : vector<128x128xf32>
    %19 = arith.mulf %18, %18 : vector<128x128xf32>
    %cst_10 = arith.constant dense<0.000000e+00> : vector<128xf32>
    %20 = vector.multi_reduction <add>, %19, %cst_10 [1] : vector<128x128xf32> to vector<128xf32>
    %21 = vector.shape_cast %20 : vector<128xf32> to vector<128x1xf32>
    %cst_11 = arith.constant 1.000000e-24 : f32
    %22 = vector.broadcast %cst_11 : f32 to vector<128x1xf32>
    %23 = arith.maximumf %21, %22 : vector<128x1xf32>
    %24 = math.rsqrt %23 : vector<128x1xf32>
    %25 = vector.broadcast %24 : vector<128x1xf32> to vector<128x128xf32>
    %26 = arith.mulf %18, %25 : vector<128x128xf32>
    %c0_12 = arith.constant 0 : index
    %c0_13 = arith.constant 0 : index
    %27 = vector.load %arg5[%c0_12, %c0_13] : memref<128x128xf32, #tpu.memory_space<vmem>>, vector<128x128xf32>
    tpu.vector_store %arg5[%c0_12, %c0_13], %26 {strides = array<i32>} : memref<128x128xf32, #tpu.memory_space<vmem>>, vector<128x128xf32>,
    %c2_i32 = arith.constant 2 : i32
    %28 = arith.cmpi eq, %arg0, %c2_i32 : i32
    %29 = arith.extui %28 : i1 to i32
    %c0_i32_14 = arith.constant 0 : i32
    %30 = arith.cmpi ne, %29, %c0_i32_14 : i32
    scf.if %30 {
      %31 = arith.mulf %26, %26 : vector<128x128xf32>
      %cst_15 = arith.constant dense<0.000000e+00> : vector<128xf32>
      %32 = vector.multi_reduction <add>, %31, %cst_15 [1] : vector<128x128xf32> to vector<128xf32>
      %33 = vector.shape_cast %32 : vector<128xf32> to vector<128x1xf32>
      %cst_16 = arith.constant 1.000000e-24 : f32
      %34 = vector.broadcast %cst_16 : f32 to vector<128x1xf32>
      %35 = arith.maximumf %33, %34 : vector<128x1xf32>
      %36 = math.rsqrt %35 : vector<128x1xf32>
      %37 = vector.broadcast %36 : vector<128x1xf32> to vector<128x128xf32>
      %38 = arith.mulf %26, %37 : vector<128x128xf32>
      %c0_17 = arith.constant 0 : index
      %c0_18 = arith.constant 0 : index
      %39 = vector.load %arg5[%c0_17, %c0_18] : memref<128x128xf32, #tpu.memory_space<vmem>>, vector<128x128xf32>
      tpu.vector_store %arg5[%c0_17, %c0_18], %38 {strides = array<i32>} : memref<128x128xf32, #tpu.memory_space<vmem>>, vector<128x128xf32>,
    } else {
    }
    return
  }
  func.func @transform_0(%arg0: i32) -> (i32, i32) {
    %c0_i32 = arith.constant 0 : i32
    %c0_i32_0 = arith.constant 0 : i32
    %c0_i32_1 = arith.constant 0 : i32
    return %c0_i32, %c0_i32_0 : i32, i32
  }
  func.func @transform_1(%arg0: i32) -> (i32, i32) {
    %c0_i32 = arith.constant 0 : i32
    %c0_i32_0 = arith.constant 0 : i32
    %c0_i32_1 = arith.constant 0 : i32
    return %c0_i32, %c0_i32_0 : i32, i32
  }
  func.func @transform_2(%arg0: i32) -> (i32, i32, i32) {
    %c0_i32 = arith.constant 0 : i32
    %c0_i32_0 = arith.constant 0 : i32
    %c0_i32_1 = arith.constant 0 : i32
    %c0_i32_2 = arith.constant 0 : i32
    return %c0_i32, %c0_i32_0, %c0_i32_1 : i32, i32, i32
  }
  func.func @transform_3(%arg0: i32) -> (i32, i32, i32) {
    %c0_i32 = arith.constant 0 : i32
    %c0_i32_0 = arith.constant 0 : i32
    %c0_i32_1 = arith.constant 0 : i32
    %c0_i32_2 = arith.constant 0 : i32
    return %c0_i32, %c0_i32_0, %c0_i32_1 : i32, i32, i32
  }
  func.func @transform_4(%arg0: i32) -> (i32, i32) {
    %c0_i32 = arith.constant 0 : i32
    %c0_i32_0 = arith.constant 0 : i32
    %c0_i32_1 = arith.constant 0 : i32
    return %c0_i32, %c0_i32_0 : i32, i32
  }
}

</mosaic_0001>

<llo_original>
// kernel: tpu_custom_call.1
$region0: #{tpu_custom_call.1}
  #allocation0 [shape = 'u32[]', space=smem, size = 0x4, offset = 0x4, fixed_abs, tag = 'smem constant byte address 0x4 - core index']
  #allocation1 [shape = 'u32[144,128]{1,0:T(1,128)}', space=vmem, size = 0x12000, scoped, tag = 'internal scratch']
  %s0 = inlined_call_operand.hbm [shape: bf16[128,128], index: 0, kind: input, shape index: {}]
  %s1 = inlined_call_operand.hbm [shape: f32[128,128], index: 1, kind: input, shape index: {}]
  %s2 = inlined_call_operand.hbm [shape: bf16[3,128,128], index: 2, kind: input, shape index: {}]
  %s3 = inlined_call_operand.vmem [shape: f32[3,1,128], index: 3, kind: input, shape index: {}]
  %s4 = inlined_call_operand.hbm [shape: f32[128,128], index: 4, kind: output, shape index: {}]
  %s5 = sld [smem:[#allocation0]]
  $region69: #{tpu_custom_call.1} parent=0
    _
  %s7 = ssub.s32 1, %s5
  %s8 = scalar_select 0, %s7, %s5
  $region1: #{tpu_custom_call.1} parent=0
    #allocation2 [shape = 'u8[32768]{0}', space=vmem, size = 0x8000, scoped, tag = 'input window, operand 0, single buffered']
    #allocation3 [shape = 's32[2]{0}', space=sflag, size = 0x8, scoped, tag = 'scoped memory for tpu_custom_call.1']
    #allocation4 [shape = 's32[2]{0}', space=sflag, size = 0x8, scoped, tag = 'scoped memory for tpu_custom_call.1']
    #allocation5 [shape = 'u8[65536]{0}', space=vmem, size = 0x10000, scoped, tag = 'input window, operand 1, single buffered']
    #allocation6 [shape = 's32[1]{0}', space=sflag, size = 0x4, scoped, tag = 'scoped memory for tpu_custom_call.1']
    #allocation7 [shape = 'u8[98304]{0}', space=vmem, size = 0x18000, scoped, tag = 'input window, operand 2, single buffered']
    #allocation8 [shape = 'u8[65536]{0}', space=vmem, size = 0x10000, scoped, tag = 'output window, operand 0, single buffered']
    %9 = vsyncpa [#allocation3], 0
    %10 = vsyncpa [#allocation6], 0
    %11 = vsyncpa [#allocation4], 0
    loop: start=0, step=1, limit=5
    $region2: #{tpu_custom_call.1} parent=1 // loop_pre_header
      _
    $region3: #{tpu_custom_call.1} parent=1 // loop_header
      %s13 = sphi 0, %s17
      %p14 = scmp.ge.s32.totalorder %s13, 5
      %s21 = sphi 0, %s21
      %s23 = sphi 0, %s21
      %s24 = sphi 0, %s23
      %s38 = sphi 0, %s24
      %s42 = sphi 0, %s42
      %s44 = sphi 0, %s42
      %s45 = sphi 0, %s44
      %s59 = sphi 0, %s45
      %s63 = sphi 0, %s63
      %s65 = sphi 0, %s63
      %s66 = sphi 0, %s65
      %s80 = sphi 0, %s66
      %s84 = sphi 0, %s84
      %s86 = sphi 0, %s84
      %s87 = sphi 0, %s86
      %s101 = sphi 0, %s87
      %s105 = sphi 0, %s105
      %s107 = sphi 0, %s105
      %s108 = sphi 0, %s107
      %s122 = sphi 0, %s108
    $region4: #{tpu_custom_call.1} parent=1 // loop_header_branch
      %16 = sbr.rel (%p14) target = $region8
    $region5: #{tpu_custom_call.1} parent=1 // loop_body
      %s18 = ssub.s32 %s13, 1
      %s19 = ssub.s32 %s13, 2
      %s20 = sadd.s32 %s13, 1
      %s22 = sadd.s32 %s21, 1
      %p25 = scmp.eq.s32.totalorder %s13, 2
      %p26 = scmp.ne.s32.totalorder %s21, %s23
      %p27 = scmp.eq.s32.totalorder %s13, 0
      %p28 = por %p26, %p27
      %p29 = scmp.ne.s32.totalorder %s21, %s23
      %p30 = scmp.eq.s32.totalorder %s18, 2
      %p31 = por %p29, %p30
      %p32 = scmp.ne.s32.totalorder %s23, %s24
      %p33 = scmp.eq.s32.totalorder %s18, 0
      %p34 = por %p32, %p33
      %p35 = scmp.ne.s32.totalorder %s23, %s24
      %p36 = scmp.eq.s32.totalorder %s19, 2
      %p37 = por %p35, %p36
      %p39 = scmp.ne.s32.totalorder %s24, %s38
      %p40 = scmp.eq.s32.totalorder %s19, 0
      %p41 = por %p39, %p40
      %s43 = sadd.s32 %s42, 1
      %p46 = scmp.eq.s32.totalorder %s13, 2
      %p47 = scmp.ne.s32.totalorder %s42, %s44
      %p48 = scmp.eq.s32.totalorder %s13, 0
      %p49 = por %p47, %p48
      %p50 = scmp.ne.s32.totalorder %s42, %s44
      %p51 = scmp.eq.s32.totalorder %s18, 2
      %p52 = por %p50, %p51
      %p53 = scmp.ne.s32.totalorder %s44, %s45
      %p54 = scmp.eq.s32.totalorder %s18, 0
      %p55 = por %p53, %p54
      %p56 = scmp.ne.s32.totalorder %s44, %s45
      %p57 = scmp.eq.s32.totalorder %s19, 2
      %p58 = por %p56, %p57
      %p60 = scmp.ne.s32.totalorder %s45, %s59
      %p61 = scmp.eq.s32.totalorder %s19, 0
      %p62 = por %p60, %p61
      %s64 = sadd.s32 %s63, 1
      %p67 = scmp.eq.s32.totalorder %s13, 2
      %p68 = scmp.ne.s32.totalorder %s63, %s65
      %p69 = scmp.eq.s32.totalorder %s13, 0
      %p70 = por %p68, %p69
      %p71 = scmp.ne.s32.totalorder %s63, %s65
      %p72 = scmp.eq.s32.totalorder %s18, 2
      %p73 = por %p71, %p72
      %p74 = scmp.ne.s32.totalorder %s65, %s66
      %p75 = scmp.eq.s32.totalorder %s18, 0
      %p76 = por %p74, %p75
      %p77 = scmp.ne.s32.totalorder %s65, %s66
      %p78 = scmp.eq.s32.totalorder %s19, 2
      %p79 = por %p77, %p78
      %p81 = scmp.ne.s32.totalorder %s66, %s80
      %p82 = scmp.eq.s32.totalorder %s19, 0
      %p83 = por %p81, %p82
      %s85 = sadd.s32 %s84, 1
      %p88 = scmp.eq.s32.totalorder %s13, 2
      %p89 = scmp.ne.s32.totalorder %s84, %s86
      %p90 = scmp.eq.s32.totalorder %s13, 0
      %p91 = por %p89, %p90
      %p92 = scmp.ne.s32.totalorder %s84, %s86
      %p93 = scmp.eq.s32.totalorder %s18, 2
      %p94 = por %p92, %p93
      %p95 = scmp.ne.s32.totalorder %s86, %s87
      %p96 = scmp.eq.s32.totalorder %s18, 0
      %p97 = por %p95, %p96
      %p98 = scmp.ne.s32.totalorder %s86, %s87
      %p99 = scmp.eq.s32.totalorder %s19, 2
      %p100 = por %p98, %p99
      %p102 = scmp.ne.s32.totalorder %s87, %s101
      %p103 = scmp.eq.s32.totalorder %s19, 0
      %p104 = por %p102, %p103
      %s106 = sadd.s32 %s105, 1
      %p109 = scmp.eq.s32.totalorder %s13, 2
      %p110 = scmp.ne.s32.totalorder %s105, %s107
      %p111 = scmp.eq.s32.totalorder %s13, 0
      %p112 = por %p110, %p111
      %p113 = scmp.ne.s32.totalorder %s105, %s107
      %p114 = scmp.eq.s32.totalorder %s18, 2
      %p115 = por %p113, %p114
      %p116 = scmp.ne.s32.totalorder %s107, %s108
      %p117 = scmp.eq.s32.totalorder %s18, 0
      %p118 = por %p116, %p117
      %p119 = scmp.ne.s32.totalorder %s107, %s108
      %p120 = scmp.eq.s32.totalorder %s19, 2
      %p121 = por %p119, %p120
      %p123 = scmp.ne.s32.totalorder %s108, %s122
      %p124 = scmp.eq.s32.totalorder %s19, 0
      %p125 = por %p123, %p124
      %p126 = scmp.le.s32.totalorder 1, %s13
      %p127 = scmp.lt.s32.totalorder %s13, 4
      %p128 = pnand %p126, %p127
      %p129 = pneg %p128
      // Predicated region
      $region9: #{tpu_custom_call.1} parent=5 // pred_check
        _
      $region10: #{tpu_custom_call.1} parent=5 // pred_check_branch
        %131 = sbr.rel (%p128) target = $region12
      $region11: #{tpu_custom_call.1} parent=5 // pred_region
        %s132 = ssub.s32 %s13, 1
        // Predicated region
        $region13: #{tpu_custom_call.1} parent=11 // pred_check
          %p133 = pneg %p34
        $region14: #{tpu_custom_call.1} parent=11 // pred_check_branch
          %135 = sbr.rel (%p133) target = $region16
        $region15: #{tpu_custom_call.1} parent=11 // pred_region
          %s137 = ssub.s32 1024, 1024
          %138 = vsyncadd [#allocation3], %s137
          %s139 = sshll.u32 [#allocation2], 4
          %s140 = int_to_ptr.vmem [resolvable:$true] %s139
          %145 = dma.hbm_to_vmem [thread:$0]  %s0, 1024, %s140, [#allocation3], 64, 64, 4
        $region16: #{tpu_custom_call.1} parent=11 // pred_fallthru
          _
        // Predicated region
        $region17: #{tpu_custom_call.1} parent=11 // pred_check
          %p146 = pneg %p55
        $region18: #{tpu_custom_call.1} parent=11 // pred_check_branch
          %148 = sbr.rel (%p146) target = $region20
        $region19: #{tpu_custom_call.1} parent=11 // pred_region
          %s150 = ssub.s32 2048, 2048
          %151 = vsyncadd [#allocation6], %s150
          %s152 = sshll.u32 [#allocation5], 4
          %s153 = int_to_ptr.vmem [resolvable:$true] %s152
          %158 = dma.hbm_to_vmem [thread:$0]  %s1, 2048, %s153, [#allocation6], 128, 128, 8
        $region20: #{tpu_custom_call.1} parent=11 // pred_fallthru
          _
        // Predicated region
        $region21: #{tpu_custom_call.1} parent=11 // pred_check
          %p159 = pneg %p76
        $region22: #{tpu_custom_call.1} parent=11 // pred_check_branch
          %161 = sbr.rel (%p159) target = $region24
        $region23: #{tpu_custom_call.1} parent=11 // pred_region
          %s163 = ssub.s32 3072, 3072
          %164 = vsyncadd [#allocation6], %s163
          %s165 = sshll.u32 [#allocation7], 4
          %s166 = int_to_ptr.vmem [resolvable:$true] %s165
          %171 = dma.hbm_to_vmem [thread:$0]  %s2, 3072, %s166, [#allocation6], 64, 64, 4
        $region24: #{tpu_custom_call.1} parent=11 // pred_fallthru
          _
        // Predicated region
        $region25: #{tpu_custom_call.1} parent=11 // pred_check
          %p172 = pneg %p97
        $region26: #{tpu_custom_call.1} parent=11 // pred_check_branch
          %174 = sbr.rel (%p172) target = $region28
        $region27: #{tpu_custom_call.1} parent=11 // pred_region
          _
        $region28: #{tpu_custom_call.1} parent=11 // pred_fallthru
          _
      $region12: #{tpu_custom_call.1} parent=5 // pred_fallthru
        _
      %p175 = scmp.lt.s32.totalorder %s13, 3
      // Predicated region
      $region29: #{tpu_custom_call.1} parent=5 // pred_check
        %p176 = pneg %p175
      $region30: #{tpu_custom_call.1} parent=5 // pred_check_branch
        %178 = sbr.rel (%p176) target = $region32
      $region31: #{tpu_custom_call.1} parent=5 // pred_region
        _
      $region32: #{tpu_custom_call.1} parent=5 // pred_fallthru
        _
      %p179 = scmp.le.s32.totalorder 1, %s13
      %p180 = scmp.lt.s32.totalorder %s13, 4
      %p181 = pnand %p179, %p180
      %p182 = pneg %p181
      // Predicated region
      $region33: #{tpu_custom_call.1} parent=5 // pred_check
        _
      $region34: #{tpu_custom_call.1} parent=5 // pred_check_branch
        %184 = sbr.rel (%p181) target = $region36
      $region35: #{tpu_custom_call.1} parent=5 // pred_region
        %s185 = ssub.s32 %s13, 1
        // Predicated region
        $region37: #{tpu_custom_call.1} parent=35 // pred_check
          %p186 = pneg %p34
        $region38: #{tpu_custom_call.1} parent=35 // pred_check_branch
          %188 = sbr.rel (%p186) target = $region40
        $region39: #{tpu_custom_call.1} parent=35 // pred_region
          %189 = dma.done [#allocation3], 1024
        $region40: #{tpu_custom_call.1} parent=35 // pred_fallthru
          _
        // Predicated region
        $region41: #{tpu_custom_call.1} parent=35 // pred_check
          %p190 = pneg %p55
        $region42: #{tpu_custom_call.1} parent=35 // pred_check_branch
          %192 = sbr.rel (%p190) target = $region44
        $region43: #{tpu_custom_call.1} parent=35 // pred_region
          %193 = dma.done [#allocation6], 2048
        $region44: #{tpu_custom_call.1} parent=35 // pred_fallthru
          _
        // Predicated region
        $region45: #{tpu_custom_call.1} parent=35 // pred_check
          %p194 = pneg %p76
        $region46: #{tpu_custom_call.1} parent=35 // pred_check_branch
          %196 = sbr.rel (%p194) target = $region48
        $region47: #{tpu_custom_call.1} parent=35 // pred_region
          %197 = dma.done [#allocation6], 3072
        $region48: #{tpu_custom_call.1} parent=35 // pred_fallthru
          _
        %p198 = pneg %p34
        %p199 = pneg %p31
        %p200 = pneg %p55
        %p201 = pneg %p52
        %p202 = pneg %p76
        %p203 = pneg %p73
        %p204 = pneg %p97
        %p205 = pneg %p94
        %p206 = pneg %p118
        %p207 = pneg %p115
        %p209 = scmp.eq.s32.totalorder %s18, 0
        // Predicated region
        $region49: #{tpu_custom_call.1} parent=35 // pred_check
          %p210 = pneg %p209
        $region50: #{tpu_custom_call.1} parent=35 // pred_check_branch
          %212 = sbr.rel (%p210) target = $region52
        $region51: #{tpu_custom_call.1} parent=35 // pred_region
          %v213 = vld [vmem:[#allocation5] sm:$0xff]
          %v214 = vld [vmem:[#allocation5 + $0x8] sm:$0xff]
          %v215 = vld [vmem:[#allocation5 + $0x10] sm:$0xff]
          %v216 = vld [vmem:[#allocation5 + $0x18] sm:$0xff]
          %v217 = vld [vmem:[#allocation5 + $0x20] sm:$0xff]
          %v218 = vld [vmem:[#allocation5 + $0x28] sm:$0xff]
          %v219 = vld [vmem:[#allocation5 + $0x30] sm:$0xff]
          %v220 = vld [vmem:[#allocation5 + $0x38] sm:$0xff]
          %v221 = vld [vmem:[#allocation5 + $0x40] sm:$0xff]
          %v222 = vld [vmem:[#allocation5 + $0x48] sm:$0xff]
          %v223 = vld [vmem:[#allocation5 + $0x50] sm:$0xff]
          %v224 = vld [vmem:[#allocation5 + $0x58] sm:$0xff]
          %v225 = vld [vmem:[#allocation5 + $0x60] sm:$0xff]
          %v226 = vld [vmem:[#allocation5 + $0x68] sm:$0xff]
          %v227 = vld [vmem:[#allocation5 + $0x70] sm:$0xff]
          %v228 = vld [vmem:[#allocation5 + $0x78] sm:$0xff]
          %229 = vst [vmem:[#allocation8] sm:$0xff] %v213
          %230 = vst [vmem:[#allocation8 + $0x8] sm:$0xff] %v214
          %231 = vst [vmem:[#allocation8 + $0x10] sm:$0xff] %v215
          %232 = vst [vmem:[#allocation8 + $0x18] sm:$0xff] %v216
          %233 = vst [vmem:[#allocation8 + $0x20] sm:$0xff] %v217
          %234 = vst [vmem:[#allocation8 + $0x28] sm:$0xff] %v218
          %235 = vst [vmem:[#allocation8 + $0x30] sm:$0xff] %v219
          %236 = vst [vmem:[#allocation8 + $0x38] sm:$0xff] %v220
          %237 = vst [vmem:[#allocation8 + $0x40] sm:$0xff] %v221
          %238 = vst [vmem:[#allocation8 + $0x48] sm:$0xff] %v222
          %239 = vst [vmem:[#allocation8 + $0x50] sm:$0xff] %v223
          %240 = vst [vmem:[#allocation8 + $0x58] sm:$0xff] %v224
          %241 = vst [vmem:[#allocation8 + $0x60] sm:$0xff] %v225
          %242 = vst [vmem:[#allocation8 + $0x68] sm:$0xff] %v226
          %243 = vst [vmem:[#allocation8 + $0x70] sm:$0xff] %v227
          %244 = vst [vmem:[#allocation8 + $0x78] sm:$0xff] %v228
        $region52: #{tpu_custom_call.1} parent=35 // pred_fallthru
          _
        %v245 = vld [vmem:[#allocation8] sm:$0xff]
        %v246 = vld [vmem:[#allocation8 + $0x8] sm:$0xff]
        %v247 = vld [vmem:[#allocation8 + $0x10] sm:$0xff]
        %v248 = vld [vmem:[#allocation8 + $0x18] sm:$0xff]
        %v249 = vld [vmem:[#allocation8 + $0x20] sm:$0xff]
        %v250 = vld [vmem:[#allocation8 + $0x28] sm:$0xff]
        %v251 = vld [vmem:[#allocation8 + $0x30] sm:$0xff]
        %v252 = vld [vmem:[#allocation8 + $0x38] sm:$0xff]
        %v253 = vld [vmem:[#allocation8 + $0x40] sm:$0xff]
        %v254 = vld [vmem:[#allocation8 + $0x48] sm:$0xff]
        %v255 = vld [vmem:[#allocation8 + $0x50] sm:$0xff]
        %v256 = vld [vmem:[#allocation8 + $0x58] sm:$0xff]
        %v257 = vld [vmem:[#allocation8 + $0x60] sm:$0xff]
        %v258 = vld [vmem:[#allocation8 + $0x68] sm:$0xff]
        %v259 = vld [vmem:[#allocation8 + $0x70] sm:$0xff]
        %v260 = vld [vmem:[#allocation8 + $0x78] sm:$0xff]
        %v261 = vpack.c.bf16 %v246, %v245
        %v262 = vpack.c.bf16 %v248, %v247
        %v263 = vpack.c.bf16 %v250, %v249
        %v264 = vpack.c.bf16 %v252, %v251
        %v265 = vpack.c.bf16 %v254, %v253
        %v266 = vpack.c.bf16 %v256, %v255
        %v267 = vpack.c.bf16 %v258, %v257
        %v268 = vpack.c.bf16 %v260, %v259
        %s269 = smul.u32 %s18, 16
        %s270 = smul.addr %s269, 4
        %s271 = scalar_lea.vmem [#allocation7], %s270
        %v272 = vld [vmem:[%s271] sm:$0xf]
        %v273 = vld [vmem:[%s271 + $0x4] sm:$0xf]
        %v274 = vld [vmem:[%s271 + $0x8] sm:$0xf]
        %v275 = vld [vmem:[%s271 + $0xc] sm:$0xf]
        %v276 = vld [vmem:[%s271 + $0x10] sm:$0xf]
        %v277 = vld [vmem:[%s271 + $0x14] sm:$0xf]
        %v278 = vld [vmem:[%s271 + $0x18] sm:$0xf]
        %v279 = vld [vmem:[%s271 + $0x1c] sm:$0xf]
        %v280 = vld [vmem:[%s271 + $0x20] sm:$0xf]
        %v281 = vld [vmem:[%s271 + $0x24] sm:$0xf]
        %v282 = vld [vmem:[%s271 + $0x28] sm:$0xf]
        %v283 = vld [vmem:[%s271 + $0x2c] sm:$0xf]
        %v284 = vld [vmem:[%s271 + $0x30] sm:$0xf]
        %v285 = vld [vmem:[%s271 + $0x34] sm:$0xf]
        %v286 = vld [vmem:[%s271 + $0x38] sm:$0xf]
        %v287 = vld [vmem:[%s271 + $0x3c] sm:$0xf]
        %v304 = vunpack.c.l.b16 %v272
        %v305 = vunpack.c.l.b16 %v273
        %v306 = vunpack.c.l.b16 %v274
        %v307 = vunpack.c.l.b16 %v275
        %v308 = vunpack.c.l.b16 %v276
        %v309 = vunpack.c.l.b16 %v277
        %v310 = vunpack.c.l.b16 %v278
        %v311 = vunpack.c.l.b16 %v279
        %v312 = vunpack.c.l.b16 %v280
        %v313 = vunpack.c.l.b16 %v281
        %v314 = vunpack.c.l.b16 %v282
        %v315 = vunpack.c.l.b16 %v283
        %v316 = vunpack.c.l.b16 %v284
        %v317 = vunpack.c.l.b16 %v285
        %v318 = vunpack.c.l.b16 %v286
        %v319 = vunpack.c.l.b16 %v287
        %v320 = vpack.c.b16 %v305, %v304
        %v321 = vpack.c.b16 %v307, %v306
        %v322 = vpack.c.b16 %v309, %v308
        %v323 = vpack.c.b16 %v311, %v310
        %v324 = vpack.c.b16 %v313, %v312
        %v325 = vpack.c.b16 %v315, %v314
        %v326 = vpack.c.b16 %v317, %v316
        %v327 = vpack.c.b16 %v319, %v318
        %336 = vmatprep.subr.bf16.mxu0 0
        %337 = vmatpush1.bf16.msra.mxu0 %v320
        %338 = vmatprep.subr.bf16.mxu0 0
        %339 = vmatpush1.bf16.msra.mxu0 %v321
        %340 = vmatprep.subr.bf16.mxu0 0
        %341 = vmatpush1.bf16.msra.mxu0 %v322
        %342 = vmatprep.subr.bf16.mxu0 0
        %343 = vmatpush1.bf16.msra.mxu0 %v323
        %344 = vmatprep.subr.bf16.mxu0 0
        %345 = vmatpush1.bf16.msra.mxu0 %v324
        %346 = vmatprep.subr.bf16.mxu0 0
        %347 = vmatpush1.bf16.msra.mxu0 %v325
        %348 = vmatprep.subr.bf16.mxu0 0
        %349 = vmatpush1.bf16.msra.mxu0 %v326
        %350 = vmatprep.subr.bf16.mxu0 0
        %351 = vmatpush1.bf16.msra.mxu0 %v327
        %352 = vmatprep.subr.bf16.mxu0 0
        %353 = vmatpush1.bf16.msra.mxu0 0
        %354 = vmatprep.subr.bf16.mxu0 0
        %355 = vmatpush1.bf16.msra.mxu0 0
        %356 = vmatprep.subr.bf16.mxu0 0
        %357 = vmatpush1.bf16.msra.mxu0 0
        %358 = vmatprep.subr.bf16.mxu0 0
        %359 = vmatpush1.bf16.msra.mxu0 0
        %360 = vmatprep.subr.bf16.mxu0 0
        %361 = vmatpush1.bf16.msra.mxu0 0
        %362 = vmatprep.subr.bf16.mxu0 0
        %363 = vmatpush1.bf16.msra.mxu0 0
        %364 = vmatprep.subr.bf16.mxu0 0
        %365 = vmatpush1.bf16.msra.mxu0 0
        %366 = vmatprep.subr.bf16.mxu0 0
        %367 = vmatpush1.bf16.msra.mxu0 0
        %368 = vmatprep.mubr.bf16.mxu0 0
        %369 = vmatmul.mubr.bf16.gmra.mrb[0].mxu0 %v261
        %v370 = vpop.f32.mrb[0].mxu0
        %v371 = vadd.f32 0.0, %v370
        %v372 = vpop.f32.mrb[0].mxu0
        %v373 = vpop.f32.mrb[0].mxu0
        %v374 = vadd.f32 0.0, %v373
        %v375 = vpop.f32.mrb[0].mxu0
        %376 = vmatprep.mubr.bf16.mxu0 0
        %377 = vmatmul.mubr.bf16.gmra.mrb[0].mxu0 %v262
        %v378 = vpop.f32.mrb[0].mxu0
        %v379 = vadd.f32 0.0, %v378
        %v380 = vpop.f32.mrb[0].mxu0
        %v381 = vpop.f32.mrb[0].mxu0
        %v382 = vadd.f32 0.0, %v381
        %v383 = vpop.f32.mrb[0].mxu0
        %384 = vmatprep.mubr.bf16.mxu0 0
        %385 = vmatmul.mubr.bf16.gmra.mrb[0].mxu0 %v263
        %v386 = vpop.f32.mrb[0].mxu0
        %v387 = vadd.f32 0.0, %v386
        %v388 = vpop.f32.mrb[0].mxu0
        %v389 = vpop.f32.mrb[0].mxu0
        %v390 = vadd.f32 0.0, %v389
        %v391 = vpop.f32.mrb[0].mxu0
        %392 = vmatprep.mubr.bf16.mxu0 0
        %393 = vmatmul.mubr.bf16.gmra.mrb[0].mxu0 %v264
        %v394 = vpop.f32.mrb[0].mxu0
        %v395 = vadd.f32 0.0, %v394
        %v396 = vpop.f32.mrb[0].mxu0
        %v397 = vpop.f32.mrb[0].mxu0
        %v398 = vadd.f32 0.0, %v397
        %v399 = vpop.f32.mrb[0].mxu0
        %400 = vmatprep.mubr.bf16.mxu0 0
        %401 = vmatmul.mubr.bf16.gmra.mrb[0].mxu0 %v265
        %v402 = vpop.f32.mrb[0].mxu0
        %v403 = vadd.f32 0.0, %v402
        %v404 = vpop.f32.mrb[0].mxu0
        %v405 = vpop.f32.mrb[0].mxu0
        %v406 = vadd.f32 0.0, %v405
        %v407 = vpop.f32.mrb[0].mxu0
        %408 = vmatprep.mubr.bf16.mxu0 0
        %409 = vmatmul.mubr.bf16.gmra.mrb[0].mxu0 %v266
        %v410 = vpop.f32.mrb[0].mxu0
        %v411 = vadd.f32 0.0, %v410
        %v412 = vpop.f32.mrb[0].mxu0
        %v413 = vpop.f32.mrb[0].mxu0
        %v414 = vadd.f32 0.0, %v413
        %v415 = vpop.f32.mrb[0].mxu0
        %416 = vmatprep.mubr.bf16.mxu0 0
        %417 = vmatmul.mubr.bf16.gmra.mrb[0].mxu0 %v267
        %v418 = vpop.f32.mrb[0].mxu0
        %v419 = vadd.f32 0.0, %v418
        %v420 = vpop.f32.mrb[0].mxu0
        %v421 = vpop.f32.mrb[0].mxu0
        %v422 = vadd.f32 0.0, %v421
        %v423 = vpop.f32.mrb[0].mxu0
        %424 = vmatprep.mubr.bf16.mxu0 0
        %425 = vmatmul.mubr.bf16.gmra.mrb[0].mxu0 %v268
        %v426 = vpop.f32.mrb[0].mxu0
        %v427 = vadd.f32 0.0, %v426
        %v428 = vpop.f32.mrb[0].mxu0
        %v429 = vpop.f32.mrb[0].mxu0
        %v430 = vadd.f32 0.0, %v429
        %v431 = vpop.f32.mrb[0].mxu0
        %432 = vdwg.mxu0
        %v433 = vld [vmem:[#allocation2] sm:$0xf]
        %v434 = vld [vmem:[#allocation2 + $0x4] sm:$0xf]
        %v435 = vld [vmem:[#allocation2 + $0x8] sm:$0xf]
        %v436 = vld [vmem:[#allocation2 + $0xc] sm:$0xf]
        %v437 = vld [vmem:[#allocation2 + $0x10] sm:$0xf]
        %v438 = vld [vmem:[#allocation2 + $0x14] sm:$0xf]
        %v439 = vld [vmem:[#allocation2 + $0x18] sm:$0xf]
        %v440 = vld [vmem:[#allocation2 + $0x1c] sm:$0xf]
        %v441 = vld [vmem:[#allocation2 + $0x20] sm:$0xf]
        %v442 = vld [vmem:[#allocation2 + $0x24] sm:$0xf]
        %v443 = vld [vmem:[#allocation2 + $0x28] sm:$0xf]
        %v444 = vld [vmem:[#allocation2 + $0x2c] sm:$0xf]
        %v445 = vld [vmem:[#allocation2 + $0x30] sm:$0xf]
        %v446 = vld [vmem:[#allocation2 + $0x34] sm:$0xf]
        %v447 = vld [vmem:[#allocation2 + $0x38] sm:$0xf]
        %v448 = vld [vmem:[#allocation2 + $0x3c] sm:$0xf]
        %v449 = vpack.c.bf16 %v374, %v371
        %v450 = vpack.c.bf16 %v382, %v379
        %v451 = vpack.c.bf16 %v390, %v387
        %v452 = vpack.c.bf16 %v398, %v395
        %v453 = vpack.c.bf16 %v406, %v403
        %v454 = vpack.c.bf16 %v414, %v411
        %v455 = vpack.c.bf16 %v422, %v419
        %v456 = vpack.c.bf16 %v430, %v427
        %s457 = scalar_lea.vmem %s3, %s18
        %v458 = vld [vmem:[%s457] sm:$0x1]
        %v460 = vlaneseq
        %v461 = vshrl.u32 %v460, 7
        %v462 = vsub.s32 0, %v461
        %v463 = vrot.slane %v458, %v462
        %v481 = vunpack.c.l.b16 %v433
        %v482 = vunpack.c.l.b16 %v434
        %v483 = vunpack.c.l.b16 %v435
        %v484 = vunpack.c.l.b16 %v436
        %v485 = vunpack.c.l.b16 %v437
        %v486 = vunpack.c.l.b16 %v438
        %v487 = vunpack.c.l.b16 %v439
        %v488 = vunpack.c.l.b16 %v440
        %v489 = vunpack.c.l.b16 %v441
        %v490 = vunpack.c.l.b16 %v442
        %v491 = vunpack.c.l.b16 %v443
        %v492 = vunpack.c.l.b16 %v444
        %v493 = vunpack.c.l.b16 %v445
        %v494 = vunpack.c.l.b16 %v446
        %v495 = vunpack.c.l.b16 %v447
        %v496 = vunpack.c.l.b16 %v448
        %v497 = vpack.c.b16 %v482, %v481
        %v498 = vpack.c.b16 %v484, %v483
        %v499 = vpack.c.b16 %v486, %v485
        %v500 = vpack.c.b16 %v488, %v487
        %v501 = vpack.c.b16 %v490, %v489
        %v502 = vpack.c.b16 %v492, %v491
        %v503 = vpack.c.b16 %v494, %v493
        %v504 = vpack.c.b16 %v496, %v495
        %513 = vmatprep.subr.bf16.mxu0 0
        %514 = vmatpush1.bf16.msra.mxu0 %v449
        %515 = vmatprep.subr.bf16.mxu0 0
        %516 = vmatpush1.bf16.msra.mxu0 %v450
        %517 = vmatprep.subr.bf16.mxu0 0
        %518 = vmatpush1.bf16.msra.mxu0 %v451
        %519 = vmatprep.subr.bf16.mxu0 0
        %520 = vmatpush1.bf16.msra.mxu0 %v452
        %521 = vmatprep.subr.bf16.mxu0 0
        %522 = vmatpush1.bf16.msra.mxu0 %v453
        %523 = vmatprep.subr.bf16.mxu0 0
        %524 = vmatpush1.bf16.msra.mxu0 %v454
        %525 = vmatprep.subr.bf16.mxu0 0
        %526 = vmatpush1.bf16.msra.mxu0 %v455
        %527 = vmatprep.subr.bf16.mxu0 0
        %528 = vmatpush1.bf16.msra.mxu0 %v456
        %529 = vmatprep.subr.bf16.mxu0 0
        %530 = vmatpush1.bf16.msra.mxu0 0
        %531 = vmatprep.subr.bf16.mxu0 0
        %532 = vmatpush1.bf16.msra.mxu0 0
        %533 = vmatprep.subr.bf16.mxu0 0
        %534 = vmatpush1.bf16.msra.mxu0 0
        %535 = vmatprep.subr.bf16.mxu0 0
        %536 = vmatpush1.bf16.msra.mxu0 0
        %537 = vmatprep.subr.bf16.mxu0 0
        %538 = vmatpush1.bf16.msra.mxu0 0
        %539 = vmatprep.subr.bf16.mxu0 0
        %540 = vmatpush1.bf16.msra.mxu0 0
        %541 = vmatprep.subr.bf16.mxu0 0
        %542 = vmatpush1.bf16.msra.mxu0 0
        %543 = vmatprep.subr.bf16.mxu0 0
        %544 = vmatpush1.bf16.msra.mxu0 0
        %545 = vmatprep.mubr.bf16.mxu0 0
        %546 = vmatmul.mubr.bf16.gmra.mrb[0].mxu0 %v497
        %v547 = vpop.f32.mrb[0].mxu0
        %v548 = vadd.f32 %v463, %v547
        %v549 = vpop.f32.mrb[0].mxu0
        %v550 = vpop.f32.mrb[0].mxu0
        %v551 = vadd.f32 %v463, %v550
        %v552 = vpop.f32.mrb[0].mxu0
        %553 = vmatprep.mubr.bf16.mxu0 0
        %554 = vmatmul.mubr.bf16.gmra.mrb[0].mxu0 %v498
        %v555 = vpop.f32.mrb[0].mxu0
        %v556 = vadd.f32 %v463, %v555
        %v557 = vpop.f32.mrb[0].mxu0
        %v558 = vpop.f32.mrb[0].mxu0
        %v559 = vadd.f32 %v463, %v558
        %v560 = vpop.f32.mrb[0].mxu0
        %561 = vmatprep.mubr.bf16.mxu0 0
        %562 = vmatmul.mubr.bf16.gmra.mrb[0].mxu0 %v499
        %v563 = vpop.f32.mrb[0].mxu0
        %v564 = vadd.f32 %v463, %v563
        %v565 = vpop.f32.mrb[0].mxu0
        %v566 = vpop.f32.mrb[0].mxu0
        %v567 = vadd.f32 %v463, %v566
        %v568 = vpop.f32.mrb[0].mxu0
        %569 = vmatprep.mubr.bf16.mxu0 0
        %570 = vmatmul.mubr.bf16.gmra.mrb[0].mxu0 %v500
        %v571 = vpop.f32.mrb[0].mxu0
        %v572 = vadd.f32 %v463, %v571
        %v573 = vpop.f32.mrb[0].mxu0
        %v574 = vpop.f32.mrb[0].mxu0
        %v575 = vadd.f32 %v463, %v574
        %v576 = vpop.f32.mrb[0].mxu0
        %577 = vmatprep.mubr.bf16.mxu0 0
        %578 = vmatmul.mubr.bf16.gmra.mrb[0].mxu0 %v501
        %v579 = vpop.f32.mrb[0].mxu0
        %v580 = vadd.f32 %v463, %v579
        %v581 = vpop.f32.mrb[0].mxu0
        %v582 = vpop.f32.mrb[0].mxu0
        %v583 = vadd.f32 %v463, %v582
        %v584 = vpop.f32.mrb[0].mxu0
        %585 = vmatprep.mubr.bf16.mxu0 0
        %586 = vmatmul.mubr.bf16.gmra.mrb[0].mxu0 %v502
        %v587 = vpop.f32.mrb[0].mxu0
        %v588 = vadd.f32 %v463, %v587
        %v589 = vpop.f32.mrb[0].mxu0
        %v590 = vpop.f32.mrb[0].mxu0
        %v591 = vadd.f32 %v463, %v590
        %v592 = vpop.f32.mrb[0].mxu0
        %593 = vmatprep.mubr.bf16.mxu0 0
        %594 = vmatmul.mubr.bf16.gmra.mrb[0].mxu0 %v503
        %v595 = vpop.f32.mrb[0].mxu0
        %v596 = vadd.f32 %v463, %v595
        %v597 = vpop.f32.mrb[0].mxu0
        %v598 = vpop.f32.mrb[0].mxu0
        %v599 = vadd.f32 %v463, %v598
        %v600 = vpop.f32.mrb[0].mxu0
        %601 = vmatprep.mubr.bf16.mxu0 0
        %602 = vmatmul.mubr.bf16.gmra.mrb[0].mxu0 %v504
        %v603 = vpop.f32.mrb[0].mxu0
        %v604 = vadd.f32 %v463, %v603
        %v605 = vpop.f32.mrb[0].mxu0
        %v606 = vpop.f32.mrb[0].mxu0
        %v607 = vadd.f32 %v463, %v606
        %v608 = vpop.f32.mrb[0].mxu0
        %609 = vdwg.mxu0
        %v610 = vmax.f32 %v548, 0.0
        %v611 = vmax.f32 %v551, 0.0
        %v612 = vmax.f32 %v556, 0.0
        %v613 = vmax.f32 %v559, 0.0
        %v614 = vmax.f32 %v564, 0.0
        %v615 = vmax.f32 %v567, 0.0
        %v616 = vmax.f32 %v572, 0.0
        %v617 = vmax.f32 %v575, 0.0
        %v618 = vmax.f32 %v580, 0.0
        %v619 = vmax.f32 %v583, 0.0
        %v620 = vmax.f32 %v588, 0.0
        %v621 = vmax.f32 %v591, 0.0
        %v622 = vmax.f32 %v596, 0.0
        %v623 = vmax.f32 %v599, 0.0
        %v624 = vmax.f32 %v604, 0.0
        %v625 = vmax.f32 %v607, 0.0
        %v626 = vmul.f32 %v610, %v610
        %v627 = vmul.f32 %v611, %v611
        %v628 = vmul.f32 %v612, %v612
        %v629 = vmul.f32 %v613, %v613
        %v630 = vmul.f32 %v614, %v614
        %v631 = vmul.f32 %v615, %v615
        %v632 = vmul.f32 %v616, %v616
        %v633 = vmul.f32 %v617, %v617
        %v634 = vmul.f32 %v618, %v618
        %v635 = vmul.f32 %v619, %v619
        %v636 = vmul.f32 %v620, %v620
        %v637 = vmul.f32 %v621, %v621
        %v638 = vmul.f32 %v622, %v622
        %v639 = vmul.f32 %v623, %v623
        %v640 = vmul.f32 %v624, %v624
        %v641 = vmul.f32 %v625, %v625
        %642 = vadd.xlane.f32.xlu0 %v626
        %v643 = vpop.xlane.xlu0 %642
        %644 = vadd.xlane.f32.xlu0 %v627
        %v645 = vpop.xlane.xlu0 %644
        %646 = vadd.xlane.f32.xlu0 %v628
        %v647 = vpop.xlane.xlu0 %646
        %648 = vadd.xlane.f32.xlu0 %v629
        %v649 = vpop.xlane.xlu0 %648
        %650 = vadd.xlane.f32.xlu0 %v630
        %v651 = vpop.xlane.xlu0 %650
        %652 = vadd.xlane.f32.xlu0 %v631
        %v653 = vpop.xlane.xlu0 %652
        %654 = vadd.xlane.f32.xlu0 %v632
        %v655 = vpop.xlane.xlu0 %654
        %656 = vadd.xlane.f32.xlu0 %v633
        %v657 = vpop.xlane.xlu0 %656
        %658 = vadd.xlane.f32.xlu0 %v634
        %v659 = vpop.xlane.xlu0 %658
        %660 = vadd.xlane.f32.xlu0 %v635
        %v661 = vpop.xlane.xlu0 %660
        %662 = vadd.xlane.f32.xlu0 %v636
        %v663 = vpop.xlane.xlu0 %662
        %664 = vadd.xlane.f32.xlu0 %v637
        %v665 = vpop.xlane.xlu0 %664
        %666 = vadd.xlane.f32.xlu0 %v638
        %v667 = vpop.xlane.xlu0 %666
        %668 = vadd.xlane.f32.xlu0 %v639
        %v669 = vpop.xlane.xlu0 %668
        %670 = vadd.xlane.f32.xlu0 %v640
        %v671 = vpop.xlane.xlu0 %670
        %672 = vadd.xlane.f32.xlu0 %v641
        %v673 = vpop.xlane.xlu0 %672
        %v674 = vmax.f32 %v643, 1e-24
        %v675 = vmax.f32 %v645, 1e-24
        %v676 = vmax.f32 %v647, 1e-24
        %v677 = vmax.f32 %v649, 1e-24
        %v678 = vmax.f32 %v651, 1e-24
        %v679 = vmax.f32 %v653, 1e-24
        %v680 = vmax.f32 %v655, 1e-24
        %v681 = vmax.f32 %v657, 1e-24
        %v682 = vmax.f32 %v659, 1e-24
        %v683 = vmax.f32 %v661, 1e-24
        %v684 = vmax.f32 %v663, 1e-24
        %v685 = vmax.f32 %v665, 1e-24
        %v686 = vmax.f32 %v667, 1e-24
        %v687 = vmax.f32 %v669, 1e-24
        %v688 = vmax.f32 %v671, 1e-24
        %v689 = vmax.f32 %v673, 1e-24
        %v690 = vrsqrt.pop %v674
        %v691 = vrsqrt.pop %v675
        %v692 = vrsqrt.pop %v676
        %v693 = vrsqrt.pop %v677
        %v694 = vrsqrt.pop %v678
        %v695 = vrsqrt.pop %v679
        %v696 = vrsqrt.pop %v680
        %v697 = vrsqrt.pop %v681
        %v698 = vrsqrt.pop %v682
        %v699 = vrsqrt.pop %v683
        %v700 = vrsqrt.pop %v684
        %v701 = vrsqrt.pop %v685
        %v702 = vrsqrt.pop %v686
        %v703 = vrsqrt.pop %v687
        %v704 = vrsqrt.pop %v688
        %v705 = vrsqrt.pop %v689
        %v706 = vmul.f32 %v610, %v690
        %v707 = vmul.f32 %v611, %v691
        %v708 = vmul.f32 %v612, %v692
        %v709 = vmul.f32 %v613, %v693
        %v710 = vmul.f32 %v614, %v694
        %v711 = vmul.f32 %v615, %v695
        %v712 = vmul.f32 %v616, %v696
        %v713 = vmul.f32 %v617, %v697
        %v714 = vmul.f32 %v618, %v698
        %v715 = vmul.f32 %v619, %v699
        %v716 = vmul.f32 %v620, %v700
        %v717 = vmul.f32 %v621, %v701
        %v718 = vmul.f32 %v622, %v702
        %v719 = vmul.f32 %v623, %v703
        %v720 = vmul.f32 %v624, %v704
        %v721 = vmul.f32 %v625, %v705
        %722 = vst [vmem:[#allocation8] sm:$0xff] %v706
        %723 = vst [vmem:[#allocation8 + $0x8] sm:$0xff] %v707
        %724 = vst [vmem:[#allocation8 + $0x10] sm:$0xff] %v708
        %725 = vst [vmem:[#allocation8 + $0x18] sm:$0xff] %v709
        %726 = vst [vmem:[#allocation8 + $0x20] sm:$0xff] %v710
        %727 = vst [vmem:[#allocation8 + $0x28] sm:$0xff] %v711
        %728 = vst [vmem:[#allocation8 + $0x30] sm:$0xff] %v712
        %729 = vst [vmem:[#allocation8 + $0x38] sm:$0xff] %v713
        %730 = vst [vmem:[#allocation8 + $0x40] sm:$0xff] %v714
        %731 = vst [vmem:[#allocation8 + $0x48] sm:$0xff] %v715
        %732 = vst [vmem:[#allocation8 + $0x50] sm:$0xff] %v716
        %733 = vst [vmem:[#allocation8 + $0x58] sm:$0xff] %v717
        %734 = vst [vmem:[#allocation8 + $0x60] sm:$0xff] %v718
        %735 = vst [vmem:[#allocation8 + $0x68] sm:$0xff] %v719
        %736 = vst [vmem:[#allocation8 + $0x70] sm:$0xff] %v720
        %737 = vst [vmem:[#allocation8 + $0x78] sm:$0xff] %v721
        %p738 = scmp.eq.s32.totalorder %s18, 2
        // Predicated region
        $region53: #{tpu_custom_call.1} parent=35 // pred_check
          %p739 = pneg %p738
        $region54: #{tpu_custom_call.1} parent=35 // pred_check_branch
          %741 = sbr.rel (%p739) target = $region56
        $region55: #{tpu_custom_call.1} parent=35 // pred_region
          %v742 = vmul.f32 %v706, %v706
          %v743 = vmul.f32 %v707, %v707
          %v744 = vmul.f32 %v708, %v708
          %v745 = vmul.f32 %v709, %v709
          %v746 = vmul.f32 %v710, %v710
          %v747 = vmul.f32 %v711, %v711
          %v748 = vmul.f32 %v712, %v712
          %v749 = vmul.f32 %v713, %v713
          %v750 = vmul.f32 %v714, %v714
          %v751 = vmul.f32 %v715, %v715
          %v752 = vmul.f32 %v716, %v716
          %v753 = vmul.f32 %v717, %v717
          %v754 = vmul.f32 %v718, %v718
          %v755 = vmul.f32 %v719, %v719
          %v756 = vmul.f32 %v720, %v720
          %v757 = vmul.f32 %v721, %v721
          %758 = vadd.xlane.f32.xlu0 %v742
          %v759 = vpop.xlane.xlu0 %758
          %760 = vadd.xlane.f32.xlu0 %v743
          %v761 = vpop.xlane.xlu0 %760
          %762 = vadd.xlane.f32.xlu0 %v744
          %v763 = vpop.xlane.xlu0 %762
          %764 = vadd.xlane.f32.xlu0 %v745
          %v765 = vpop.xlane.xlu0 %764
          %766 = vadd.xlane.f32.xlu0 %v746
          %v767 = vpop.xlane.xlu0 %766
          %768 = vadd.xlane.f32.xlu0 %v747
          %v769 = vpop.xlane.xlu0 %768
          %770 = vadd.xlane.f32.xlu0 %v748
          %v771 = vpop.xlane.xlu0 %770
          %772 = vadd.xlane.f32.xlu0 %v749
          %v773 = vpop.xlane.xlu0 %772
          %774 = vadd.xlane.f32.xlu0 %v750
          %v775 = vpop.xlane.xlu0 %774
          %776 = vadd.xlane.f32.xlu0 %v751
          %v777 = vpop.xlane.xlu0 %776
          %778 = vadd.xlane.f32.xlu0 %v752
          %v779 = vpop.xlane.xlu0 %778
          %780 = vadd.xlane.f32.xlu0 %v753
          %v781 = vpop.xlane.xlu0 %780
          %782 = vadd.xlane.f32.xlu0 %v754
          %v783 = vpop.xlane.xlu0 %782
          %784 = vadd.xlane.f32.xlu0 %v755
          %v785 = vpop.xlane.xlu0 %784
          %786 = vadd.xlane.f32.xlu0 %v756
          %v787 = vpop.xlane.xlu0 %786
          %788 = vadd.xlane.f32.xlu0 %v757
          %v789 = vpop.xlane.xlu0 %788
          %v790 = vmax.f32 %v759, 1e-24
          %v791 = vmax.f32 %v761, 1e-24
          %v792 = vmax.f32 %v763, 1e-24
          %v793 = vmax.f32 %v765, 1e-24
          %v794 = vmax.f32 %v767, 1e-24
          %v795 = vmax.f32 %v769, 1e-24
          %v796 = vmax.f32 %v771, 1e-24
          %v797 = vmax.f32 %v773, 1e-24
          %v798 = vmax.f32 %v775, 1e-24
          %v799 = vmax.f32 %v777, 1e-24
          %v800 = vmax.f32 %v779, 1e-24
          %v801 = vmax.f32 %v781, 1e-24
          %v802 = vmax.f32 %v783, 1e-24
          %v803 = vmax.f32 %v785, 1e-24
          %v804 = vmax.f32 %v787, 1e-24
          %v805 = vmax.f32 %v789, 1e-24
          %v806 = vrsqrt.pop %v790
          %v807 = vrsqrt.pop %v791
          %v808 = vrsqrt.pop %v792
          %v809 = vrsqrt.pop %v793
          %v810 = vrsqrt.pop %v794
          %v811 = vrsqrt.pop %v795
          %v812 = vrsqrt.pop %v796
          %v813 = vrsqrt.pop %v797
          %v814 = vrsqrt.pop %v798
          %v815 = vrsqrt.pop %v799
          %v816 = vrsqrt.pop %v800
          %v817 = vrsqrt.pop %v801
          %v818 = vrsqrt.pop %v802
          %v819 = vrsqrt.pop %v803
          %v820 = vrsqrt.pop %v804
          %v821 = vrsqrt.pop %v805
          %v822 = vmul.f32 %v706, %v806
          %v823 = vmul.f32 %v707, %v807
          %v824 = vmul.f32 %v708, %v808
          %v825 = vmul.f32 %v709, %v809
          %v826 = vmul.f32 %v710, %v810
          %v827 = vmul.f32 %v711, %v811
          %v828 = vmul.f32 %v712, %v812
          %v829 = vmul.f32 %v713, %v813
          %v830 = vmul.f32 %v714, %v814
          %v831 = vmul.f32 %v715, %v815
          %v832 = vmul.f32 %v716, %v816
          %v833 = vmul.f32 %v717, %v817
          %v834 = vmul.f32 %v718, %v818
          %v835 = vmul.f32 %v719, %v819
          %v836 = vmul.f32 %v720, %v820
          %v837 = vmul.f32 %v721, %v821
          %838 = vst [vmem:[#allocation8] sm:$0xff] %v822
          %839 = vst [vmem:[#allocation8 + $0x8] sm:$0xff] %v823
          %840 = vst [vmem:[#allocation8 + $0x10] sm:$0xff] %v824
          %841 = vst [vmem:[#allocation8 + $0x18] sm:$0xff] %v825
          %842 = vst [vmem:[#allocation8 + $0x20] sm:$0xff] %v826
          %843 = vst [vmem:[#allocation8 + $0x28] sm:$0xff] %v827
          %844 = vst [vmem:[#allocation8 + $0x30] sm:$0xff] %v828
          %845 = vst [vmem:[#allocation8 + $0x38] sm:$0xff] %v829
          %846 = vst [vmem:[#allocation8 + $0x40] sm:$0xff] %v830
          %847 = vst [vmem:[#allocation8 + $0x48] sm:$0xff] %v831
          %848 = vst [vmem:[#allocation8 + $0x50] sm:$0xff] %v832
          %849 = vst [vmem:[#allocation8 + $0x58] sm:$0xff] %v833
          %850 = vst [vmem:[#allocation8 + $0x60] sm:$0xff] %v834
          %851 = vst [vmem:[#allocation8 + $0x68] sm:$0xff] %v835
          %852 = vst [vmem:[#allocation8 + $0x70] sm:$0xff] %v836
          %853 = vst [vmem:[#allocation8 + $0x78] sm:$0xff] %v837
        $region56: #{tpu_custom_call.1} parent=35 // pred_fallthru
          _
        // Predicated region
        $region57: #{tpu_custom_call.1} parent=35 // pred_check
          %p854 = pneg %p115
        $region58: #{tpu_custom_call.1} parent=35 // pred_check_branch
          %856 = sbr.rel (%p854) target = $region60
        $region59: #{tpu_custom_call.1} parent=35 // pred_region
          %s858 = ssub.s32 2048, 2048
          %859 = vsyncadd [#allocation4], %s858
          %s860 = sshll.u32 [#allocation8], 4
          %s861 = int_to_ptr.vmem [resolvable:$true] %s860
          %866 = dma.vmem_to_hbm [thread:$0]  %s861, 2048, %s4, [#allocation4], 128, 128, 8
        $region60: #{tpu_custom_call.1} parent=35 // pred_fallthru
          _
        // Predicated region
        $region61: #{tpu_custom_call.1} parent=35 // pred_check
          %p867 = pneg %p115
        $region62: #{tpu_custom_call.1} parent=35 // pred_check_branch
          %869 = sbr.rel (%p867) target = $region64
        $region63: #{tpu_custom_call.1} parent=35 // pred_region
          %870 = dma.done [#allocation4], 2048
        $region64: #{tpu_custom_call.1} parent=35 // pred_fallthru
          _
      $region36: #{tpu_custom_call.1} parent=5 // pred_fallthru
        _
      %p871 = scmp.le.s32.totalorder 2, %s13
      // Predicated region
      $region65: #{tpu_custom_call.1} parent=5 // pred_check
        %p872 = pneg %p871
      $region66: #{tpu_custom_call.1} parent=5 // pred_check_branch
        %874 = sbr.rel (%p872) target = $region68
      $region67: #{tpu_custom_call.1} parent=5 // pred_region
        %s875 = ssub.s32 %s13, 2
      $region68: #{tpu_custom_call.1} parent=5 // pred_fallthru
        _
    $region6: #{tpu_custom_call.1} parent=1 // loop_footer
      %s17 = sadd.s32 1, %s13
    $region7: #{tpu_custom_call.1} parent=1 // loop_footer_branch
      %12 = sbr.rel target = $region3
    $region8: #{tpu_custom_call.1} parent=1 // loop_exit
      _
    %876 = vsyncpa [#allocation3], 1
    %s877 = scalar_lea.sflag [#allocation3], 1
    %878 = vsyncpa %s877, 1
    %879 = vsyncpa [#allocation6], 1
    %880 = vsyncpa [#allocation4], 1
    %s881 = scalar_lea.sflag [#allocation4], 1
    %882 = vsyncpa %s881, 1

// kernel: tpu_custom_call.1
$region0: #{tpu_custom_call.1}
  #allocation0 [shape = 'u32[]', space=smem, size = 0x4, offset = 0x4, fixed_abs, tag = 'smem constant byte address 0x4 - core index']
  #allocation1 [shape = 'u32[144,128]{1,0:T(1,128)}', space=vmem, size = 0x12000, scoped, tag = 'internal scratch']
  %s0 = inlined_call_operand.hbm [shape: bf16[128,128], index: 0, kind: input, shape index: {}]
  %s1 = inlined_call_operand.hbm [shape: f32[128,128], index: 1, kind: input, shape index: {}]
  %s2 = inlined_call_operand.hbm [shape: bf16[3,128,128], index: 2, kind: input, shape index: {}]
  %s3 = inlined_call_operand.vmem [shape: f32[3,1,128], index: 3, kind: input, shape index: {}]
  %s4 = inlined_call_operand.hbm [shape: f32[128,128], index: 4, kind: output, shape index: {}]
  %s5 = sld [smem:[#allocation0]]
  $region69: #{tpu_custom_call.1} parent=0
    _
  %s7 = ssub.s32 1, %s5
  %s8 = scalar_select 0, %s7, %s5
  $region1: #{tpu_custom_call.1} parent=0
    #allocation2 [shape = 'u8[32768]{0}', space=vmem, size = 0x8000, scoped, tag = 'input window, operand 0, single buffered']
    #allocation3 [shape = 's32[2]{0}', space=sflag, size = 0x8, scoped, tag = 'scoped memory for tpu_custom_call.1']
    #allocation4 [shape = 's32[2]{0}', space=sflag, size = 0x8, scoped, tag = 'scoped memory for tpu_custom_call.1']
    #allocation5 [shape = 'u8[65536]{0}', space=vmem, size = 0x10000, scoped, tag = 'input window, operand 1, single buffered']
    #allocation6 [shape = 's32[1]{0}', space=sflag, size = 0x4, scoped, tag = 'scoped memory for tpu_custom_call.1']
    #allocation7 [shape = 'u8[98304]{0}', space=vmem, size = 0x18000, scoped, tag = 'input window, operand 2, single buffered']
    #allocation8 [shape = 'u8[65536]{0}', space=vmem, size = 0x10000, scoped, tag = 'output window, operand 0, single buffered']
    %9 = vsyncpa [#allocation3], 0
    %10 = vsyncpa [#allocation6], 0
    %11 = vsyncpa [#allocation4], 0
    loop: start=0, step=1, limit=5
    $region2: #{tpu_custom_call.1} parent=1 // loop_pre_header
      _
    $region3: #{tpu_custom_call.1} parent=1 // loop_header
      %s13 = sphi 0, %s17
      %p14 = scmp.ge.s32.totalorder %s13, 5
      %s21 = sphi 0, %s21
      %s23 = sphi 0, %s21
      %s24 = sphi 0, %s23
      %s38 = sphi 0, %s24
      %s42 = sphi 0, %s42
      %s44 = sphi 0, %s42
      %s45 = sphi 0, %s44
      %s59 = sphi 0, %s45
      %s63 = sphi 0, %s63
      %s65 = sphi 0, %s63
      %s66 = sphi 0, %s65
      %s80 = sphi 0, %s66
      %s84 = sphi 0, %s84
      %s86 = sphi 0, %s84
      %s87 = sphi 0, %s86
      %s101 = sphi 0, %s87
      %s105 = sphi 0, %s105
      %s107 = sphi 0, %s105
      %s108 = sphi 0, %s107
      %s122 = sphi 0, %s108
    $region4: #{tpu_custom_call.1} parent=1 // loop_header_branch
      %16 = sbr.rel (%p14) target = $region8
    $region5: #{tpu_custom_call.1} parent=1 // loop_body
      %s18 = ssub.s32 %s13, 1
      %s19 = ssub.s32 %s13, 2
      %s20 = sadd.s32 %s13, 1
      %s22 = sadd.s32 %s21, 1
      %p25 = scmp.eq.s32.totalorder %s13, 2
      %p26 = scmp.ne.s32.totalorder %s21, %s23
      %p27 = scmp.eq.s32.totalorder %s13, 0
      %p28 = por %p26, %p27
      %p29 = scmp.ne.s32.totalorder %s21, %s23
      %p30 = scmp.eq.s32.totalorder %s18, 2
      %p31 = por %p29, %p30
      %p32 = scmp.ne.s32.totalorder %s23, %s24
      %p33 = scmp.eq.s32.totalorder %s18, 0
      %p34 = por %p32, %p33
      %p35 = scmp.ne.s32.totalorder %s23, %s24
      %p36 = scmp.eq.s32.totalorder %s19, 2
      %p37 = por %p35, %p36
      %p39 = scmp.ne.s32.totalorder %s24, %s38
      %p40 = scmp.eq.s32.totalorder %s19, 0
      %p41 = por %p39, %p40
      %s43 = sadd.s32 %s42, 1
      %p46 = scmp.eq.s32.totalorder %s13, 2
      %p47 = scmp.ne.s32.totalorder %s42, %s44
      %p48 = scmp.eq.s32.totalorder %s13, 0
      %p49 = por %p47, %p48
      %p50 = scmp.ne.s32.totalorder %s42, %s44
      %p51 = scmp.eq.s32.totalorder %s18, 2
      %p52 = por %p50, %p51
      %p53 = scmp.ne.s32.totalorder %s44, %s45
      %p54 = scmp.eq.s32.totalorder %s18, 0
      %p55 = por %p53, %p54
      %p56 = scmp.ne.s32.totalorder %s44, %s45
      %p57 = scmp.eq.s32.totalorder %s19, 2
      %p58 = por %p56, %p57
      %p60 = scmp.ne.s32.totalorder %s45, %s59
      %p61 = scmp.eq.s32.totalorder %s19, 0
      %p62 = por %p60, %p61
      %s64 = sadd.s32 %s63, 1
      %p67 = scmp.eq.s32.totalorder %s13, 2
      %p68 = scmp.ne.s32.totalorder %s63, %s65
      %p69 = scmp.eq.s32.totalorder %s13, 0
      %p70 = por %p68, %p69
      %p71 = scmp.ne.s32.totalorder %s63, %s65
      %p72 = scmp.eq.s32.totalorder %s18, 2
      %p73 = por %p71, %p72
      %p74 = scmp.ne.s32.totalorder %s65, %s66
      %p75 = scmp.eq.s32.totalorder %s18, 0
      %p76 = por %p74, %p75
      %p77 = scmp.ne.s32.totalorder %s65, %s66
      %p78 = scmp.eq.s32.totalorder %s19, 2
      %p79 = por %p77, %p78
      %p81 = scmp.ne.s32.totalorder %s66, %s80
      %p82 = scmp.eq.s32.totalorder %s19, 0
      %p83 = por %p81, %p82
      %s85 = sadd.s32 %s84, 1
      %p88 = scmp.eq.s32.totalorder %s13, 2
      %p89 = scmp.ne.s32.totalorder %s84, %s86
      %p90 = scmp.eq.s32.totalorder %s13, 0
      %p91 = por %p89, %p90
      %p92 = scmp.ne.s32.totalorder %s84, %s86
      %p93 = scmp.eq.s32.totalorder %s18, 2
      %p94 = por %p92, %p93
      %p95 = scmp.ne.s32.totalorder %s86, %s87
      %p96 = scmp.eq.s32.totalorder %s18, 0
      %p97 = por %p95, %p96
      %p98 = scmp.ne.s32.totalorder %s86, %s87
      %p99 = scmp.eq.s32.totalorder %s19, 2
      %p100 = por %p98, %p99
      %p102 = scmp.ne.s32.totalorder %s87, %s101
      %p103 = scmp.eq.s32.totalorder %s19, 0
      %p104 = por %p102, %p103
      %s106 = sadd.s32 %s105, 1
      %p109 = scmp.eq.s32.totalorder %s13, 2
      %p110 = scmp.ne.s32.totalorder %s105, %s107
      %p111 = scmp.eq.s32.totalorder %s13, 0
      %p112 = por %p110, %p111
      %p113 = scmp.ne.s32.totalorder %s105, %s107
      %p114 = scmp.eq.s32.totalorder %s18, 2
      %p115 = por %p113, %p114
      %p116 = scmp.ne.s32.totalorder %s107, %s108
      %p117 = scmp.eq.s32.totalorder %s18, 0
      %p118 = por %p116, %p117
      %p119 = scmp.ne.s32.totalorder %s107, %s108
      %p120 = scmp.eq.s32.totalorder %s19, 2
      %p121 = por %p119, %p120
      %p123 = scmp.ne.s32.totalorder %s108, %s122
      %p124 = scmp.eq.s32.totalorder %s19, 0
      %p125 = por %p123, %p124
      %p126 = scmp.le.s32.totalorder 1, %s13
      %p127 = scmp.lt.s32.totalorder %s13, 4
      %p128 = pnand %p126, %p127
      %p129 = pneg %p128
      // Predicated region
      $region9: #{tpu_custom_call.1} parent=5 // pred_check
        _
      $region10: #{tpu_custom_call.1} parent=5 // pred_check_branch
        %131 = sbr.rel (%p128) target = $region12
      $region11: #{tpu_custom_call.1} parent=5 // pred_region
        %s132 = ssub.s32 %s13, 1
        // Predicated region
        $region13: #{tpu_custom_call.1} parent=11 // pred_check
          %p133 = pneg %p34
        $region14: #{tpu_custom_call.1} parent=11 // pred_check_branch
          %135 = sbr.rel (%p133) target = $region16
        $region15: #{tpu_custom_call.1} parent=11 // pred_region
          %s137 = ssub.s32 1024, 1024
          %138 = vsyncadd [#allocation3], %s137
          %s139 = sshll.u32 [#allocation2], 4
          %s140 = int_to_ptr.vmem [resolvable:$true] %s139
          %145 = dma.hbm_to_vmem [thread:$0]  %s0, 1024, %s140, [#allocation3], 64, 64, 4
        $region16: #{tpu_custom_call.1} parent=11 // pred_fallthru
          _
        // Predicated region
        $region17: #{tpu_custom_call.1} parent=11 // pred_check
          %p146 = pneg %p55
        $region18: #{tpu_custom_call.1} parent=11 // pred_check_branch
          %148 = sbr.rel (%p146) target = $region20
        $region19: #{tpu_custom_call.1} parent=11 // pred_region
          %s150 = ssub.s32 2048, 2048
          %151 = vsyncadd [#allocation6], %s150
          %s152 = sshll.u32 [#allocation5], 4
          %s153 = int_to_ptr.vmem [resolvable:$true] %s152
          %158 = dma.hbm_to_vmem [thread:$0]  %s1, 2048, %s153, [#allocation6], 128, 128, 8
        $region20: #{tpu_custom_call.1} parent=11 // pred_fallthru
          _
        // Predicated region
        $region21: #{tpu_custom_call.1} parent=11 // pred_check
          %p159 = pneg %p76
        $region22: #{tpu_custom_call.1} parent=11 // pred_check_branch
          %161 = sbr.rel (%p159) target = $region24
        $region23: #{tpu_custom_call.1} parent=11 // pred_region
          %s163 = ssub.s32 3072, 3072
          %164 = vsyncadd [#allocation6], %s163
          %s165 = sshll.u32 [#allocation7], 4
          %s166 = int_to_ptr.vmem [resolvable:$true] %s165
          %171 = dma.hbm_to_vmem [thread:$0]  %s2, 3072, %s166, [#allocation6], 64, 64, 4
        $region24: #{tpu_custom_call.1} parent=11 // pred_fallthru
          _
        // Predicated region
        $region25: #{tpu_custom_call.1} parent=11 // pred_check
          %p172 = pneg %p97
        $region26: #{tpu_custom_call.1} parent=11 // pred_check_branch
          %174 = sbr.rel (%p172) target = $region28
        $region27: #{tpu_custom_call.1} parent=11 // pred_region
          _
        $region28: #{tpu_custom_call.1} parent=11 // pred_fallthru
          _
      $region12: #{tpu_custom_call.1} parent=5 // pred_fallthru
        _
      %p175 = scmp.lt.s32.totalorder %s13, 3
      // Predicated region
      $region29: #{tpu_custom_call.1} parent=5 // pred_check
        %p176 = pneg %p175
      $region30: #{tpu_custom_call.1} parent=5 // pred_check_branch
        %178 = sbr.rel (%p176) target = $region32
      $region31: #{tpu_custom_call.1} parent=5 // pred_region
        _
      $region32: #{tpu_custom_call.1} parent=5 // pred_fallthru
        _
      %p179 = scmp.le.s32.totalorder 1, %s13
      %p180 = scmp.lt.s32.totalorder %s13, 4
      %p181 = pnand %p179, %p180
      %p182 = pneg %p181
      // Predicated region
      $region33: #{tpu_custom_call.1} parent=5 // pred_check
        _
      $region34: #{tpu_custom_call.1} parent=5 // pred_check_branch
        %184 = sbr.rel (%p181) target = $region36
      $region35: #{tpu_custom_call.1} parent=5 // pred_region
        %s185 = ssub.s32 %s13, 1
        // Predicated region
        $region37: #{tpu_custom_call.1} parent=35 // pred_check
          %p186 = pneg %p34
        $region38: #{tpu_custom_call.1} parent=35 // pred_check_branch
          %188 = sbr.rel (%p186) target = $region40
        $region39: #{tpu_custom_call.1} parent=35 // pred_region
          %189 = dma.done [#allocation3], 1024
        $region40: #{tpu_custom_call.1} parent=35 // pred_fallthru
          _
        // Predicated region
        $region41: #{tpu_custom_call.1} parent=35 // pred_check
          %p190 = pneg %p55
        $region42: #{tpu_custom_call.1} parent=35 // pred_check_branch
          %192 = sbr.rel (%p190) target = $region44
        $region43: #{tpu_custom_call.1} parent=35 // pred_region
          %193 = dma.done [#allocation6], 2048
        $region44: #{tpu_custom_call.1} parent=35 // pred_fallthru
          _
        // Predicated region
        $region45: #{tpu_custom_call.1} parent=35 // pred_check
          %p194 = pneg %p76
        $region46: #{tpu_custom_call.1} parent=35 // pred_check_branch
          %196 = sbr.rel (%p194) target = $region48
        $region47: #{tpu_custom_call.1} parent=35 // pred_region
          %197 = dma.done [#allocation6], 3072
        $region48: #{tpu_custom_call.1} parent=35 // pred_fallthru
          _
        %p198 = pneg %p34
        %p199 = pneg %p31
        %p200 = pneg %p55
        %p201 = pneg %p52
        %p202 = pneg %p76
        %p203 = pneg %p73
        %p204 = pneg %p97
        %p205 = pneg %p94
        %p206 = pneg %p118
        %p207 = pneg %p115
        %p209 = scmp.eq.s32.totalorder %s18, 0
        // Predicated region
        $region49: #{tpu_custom_call.1} parent=35 // pred_check
          %p210 = pneg %p209
        $region50: #{tpu_custom_call.1} parent=35 // pred_check_branch
          %212 = sbr.rel (%p210) target = $region52
        $region51: #{tpu_custom_call.1} parent=35 // pred_region
          %v213 = vld [vmem:[#allocation5] sm:$0xff]
          %v214 = vld [vmem:[#allocation5 + $0x8] sm:$0xff]
          %v215 = vld [vmem:[#allocation5 + $0x10] sm:$0xff]
          %v216 = vld [vmem:[#allocation5 + $0x18] sm:$0xff]
          %v217 = vld [vmem:[#allocation5 + $0x20] sm:$0xff]
          %v218 = vld [vmem:[#allocation5 + $0x28] sm:$0xff]
          %v219 = vld [vmem:[#allocation5 + $0x30] sm:$0xff]
          %v220 = vld [vmem:[#allocation5 + $0x38] sm:$0xff]
          %v221 = vld [vmem:[#allocation5 + $0x40] sm:$0xff]
          %v222 = vld [vmem:[#allocation5 + $0x48] sm:$0xff]
          %v223 = vld [vmem:[#allocation5 + $0x50] sm:$0xff]
          %v224 = vld [vmem:[#allocation5 + $0x58] sm:$0xff]
          %v225 = vld [vmem:[#allocation5 + $0x60] sm:$0xff]
          %v226 = vld [vmem:[#allocation5 + $0x68] sm:$0xff]
          %v227 = vld [vmem:[#allocation5 + $0x70] sm:$0xff]
          %v228 = vld [vmem:[#allocation5 + $0x78] sm:$0xff]
          %229 = vst [vmem:[#allocation8] sm:$0xff] %v213
          %230 = vst [vmem:[#allocation8 + $0x8] sm:$0xff] %v214
          %231 = vst [vmem:[#allocation8 + $0x10] sm:$0xff] %v215
          %232 = vst [vmem:[#allocation8 + $0x18] sm:$0xff] %v216
          %233 = vst [vmem:[#allocation8 + $0x20] sm:$0xff] %v217
          %234 = vst [vmem:[#allocation8 + $0x28] sm:$0xff] %v218
          %235 = vst [vmem:[#allocation8 + $0x30] sm:$0xff] %v219
          %236 = vst [vmem:[#allocation8 + $0x38] sm:$0xff] %v220
          %237 = vst [vmem:[#allocation8 + $0x40] sm:$0xff] %v221
          %238 = vst [vmem:[#allocation8 + $0x48] sm:$0xff] %v222
          %239 = vst [vmem:[#allocation8 + $0x50] sm:$0xff] %v223
          %240 = vst [vmem:[#allocation8 + $0x58] sm:$0xff] %v224
          %241 = vst [vmem:[#allocation8 + $0x60] sm:$0xff] %v225
          %242 = vst [vmem:[#allocation8 + $0x68] sm:$0xff] %v226
          %243 = vst [vmem:[#allocation8 + $0x70] sm:$0xff] %v227
          %244 = vst [vmem:[#allocation8 + $0x78] sm:$0xff] %v228
        $region52: #{tpu_custom_call.1} parent=35 // pred_fallthru
          _
        %v245 = vld [vmem:[#allocation8] sm:$0xff]
        %v246 = vld [vmem:[#allocation8 + $0x8] sm:$0xff]
        %v247 = vld [vmem:[#allocation8 + $0x10] sm:$0xff]
        %v248 = vld [vmem:[#allocation8 + $0x18] sm:$0xff]
        %v249 = vld [vmem:[#allocation8 + $0x20] sm:$0xff]
        %v250 = vld [vmem:[#allocation8 + $0x28] sm:$0xff]
        %v251 = vld [vmem:[#allocation8 + $0x30] sm:$0xff]
        %v252 = vld [vmem:[#allocation8 + $0x38] sm:$0xff]
        %v253 = vld [vmem:[#allocation8 + $0x40] sm:$0xff]
        %v254 = vld [vmem:[#allocation8 + $0x48] sm:$0xff]
        %v255 = vld [vmem:[#allocation8 + $0x50] sm:$0xff]
        %v256 = vld [vmem:[#allocation8 + $0x58] sm:$0xff]
        %v257 = vld [vmem:[#allocation8 + $0x60] sm:$0xff]
        %v258 = vld [vmem:[#allocation8 + $0x68] sm:$0xff]
        %v259 = vld [vmem:[#allocation8 + $0x70] sm:$0xff]
        %v260 = vld [vmem:[#allocation8 + $0x78] sm:$0xff]
        %v261 = vpack.c.bf16 %v246, %v245
        %v262 = vpack.c.bf16 %v248, %v247
        %v263 = vpack.c.bf16 %v250, %v249
        %v264 = vpack.c.bf16 %v252, %v251
        %v265 = vpack.c.bf16 %v254, %v253
        %v266 = vpack.c.bf16 %v256, %v255
        %v267 = vpack.c.bf16 %v258, %v257
        %v268 = vpack.c.bf16 %v260, %v259
        %s269 = smul.u32 %s18, 16
        %s270 = smul.addr %s269, 4
        %s271 = scalar_lea.vmem [#allocation7], %s270
        %v272 = vld [vmem:[%s271] sm:$0xf]
        %v273 = vld [vmem:[%s271 + $0x4] sm:$0xf]
        %v274 = vld [vmem:[%s271 + $0x8] sm:$0xf]
        %v275 = vld [vmem:[%s271 + $0xc] sm:$0xf]
        %v276 = vld [vmem:[%s271 + $0x10] sm:$0xf]
        %v277 = vld [vmem:[%s271 + $0x14] sm:$0xf]
        %v278 = vld [vmem:[%s271 + $0x18] sm:$0xf]
        %v279 = vld [vmem:[%s271 + $0x1c] sm:$0xf]
        %v280 = vld [vmem:[%s271 + $0x20] sm:$0xf]
        %v281 = vld [vmem:[%s271 + $0x24] sm:$0xf]
        %v282 = vld [vmem:[%s271 + $0x28] sm:$0xf]
        %v283 = vld [vmem:[%s271 + $0x2c] sm:$0xf]
        %v284 = vld [vmem:[%s271 + $0x30] sm:$0xf]
        %v285 = vld [vmem:[%s271 + $0x34] sm:$0xf]
        %v286 = vld [vmem:[%s271 + $0x38] sm:$0xf]
        %v287 = vld [vmem:[%s271 + $0x3c] sm:$0xf]
        %v304 = vunpack.c.l.b16 %v272
        %v305 = vunpack.c.l.b16 %v273
        %v306 = vunpack.c.l.b16 %v274
        %v307 = vunpack.c.l.b16 %v275
        %v308 = vunpack.c.l.b16 %v276
        %v309 = vunpack.c.l.b16 %v277
        %v310 = vunpack.c.l.b16 %v278
        %v311 = vunpack.c.l.b16 %v279
        %v312 = vunpack.c.l.b16 %v280
        %v313 = vunpack.c.l.b16 %v281
        %v314 = vunpack.c.l.b16 %v282
        %v315 = vunpack.c.l.b16 %v283
        %v316 = vunpack.c.l.b16 %v284
        %v317 = vunpack.c.l.b16 %v285
        %v318 = vunpack.c.l.b16 %v286
        %v319 = vunpack.c.l.b16 %v287
        %v320 = vpack.c.b16 %v305, %v304
        %v321 = vpack.c.b16 %v307, %v306
        %v322 = vpack.c.b16 %v309, %v308
        %v323 = vpack.c.b16 %v311, %v310
        %v324 = vpack.c.b16 %v313, %v312
        %v325 = vpack.c.b16 %v315, %v314
        %v326 = vpack.c.b16 %v317, %v316
        %v327 = vpack.c.b16 %v319, %v318
        %336 = vmatprep.subr.bf16.mxu0 0
        %337 = vmatpush1.bf16.msra.mxu0 %v320
        %338 = vmatprep.subr.bf16.mxu0 0
        %339 = vmatpush1.bf16.msra.mxu0 %v321
        %340 = vmatprep.subr.bf16.mxu0 0
        %341 = vmatpush1.bf16.msra.mxu0 %v322
        %342 = vmatprep.subr.bf16.mxu0 0
        %343 = vmatpush1.bf16.msra.mxu0 %v323
        %344 = vmatprep.subr.bf16.mxu0 0
        %345 = vmatpush1.bf16.msra.mxu0 %v324
        %346 = vmatprep.subr.bf16.mxu0 0
        %347 = vmatpush1.bf16.msra.mxu0 %v325
        %348 = vmatprep.subr.bf16.mxu0 0
        %349 = vmatpush1.bf16.msra.mxu0 %v326
        %350 = vmatprep.subr.bf16.mxu0 0
        %351 = vmatpush1.bf16.msra.mxu0 %v327
        %352 = vmatprep.subr.bf16.mxu0 0
        %353 = vmatpush1.bf16.msra.mxu0 0
        %354 = vmatprep.subr.bf16.mxu0 0
        %355 = vmatpush1.bf16.msra.mxu0 0
        %356 = vmatprep.subr.bf16.mxu0 0
        %357 = vmatpush1.bf16.msra.mxu0 0
        %358 = vmatprep.subr.bf16.mxu0 0
        %359 = vmatpush1.bf16.msra.mxu0 0
        %360 = vmatprep.subr.bf16.mxu0 0
        %361 = vmatpush1.bf16.msra.mxu0 0
        %362 = vmatprep.subr.bf16.mxu0 0
        %363 = vmatpush1.bf16.msra.mxu0 0
        %364 = vmatprep.subr.bf16.mxu0 0
        %365 = vmatpush1.bf16.msra.mxu0 0
        %366 = vmatprep.subr.bf16.mxu0 0
        %367 = vmatpush1.bf16.msra.mxu0 0
        %368 = vmatprep.mubr.bf16.mxu0 0
        %369 = vmatmul.mubr.bf16.gmra.mrb[0].mxu0 %v261
        %v370 = vpop.f32.mrb[0].mxu0
        %v371 = vadd.f32 0.0, %v370
        %v372 = vpop.f32.mrb[0].mxu0
        %v373 = vpop.f32.mrb[0].mxu0
        %v374 = vadd.f32 0.0, %v373
        %v375 = vpop.f32.mrb[0].mxu0
        %376 = vmatprep.mubr.bf16.mxu0 0
        %377 = vmatmul.mubr.bf16.gmra.mrb[0].mxu0 %v262
        %v378 = vpop.f32.mrb[0].mxu0
        %v379 = vadd.f32 0.0, %v378
        %v380 = vpop.f32.mrb[0].mxu0
        %v381 = vpop.f32.mrb[0].mxu0
        %v382 = vadd.f32 0.0, %v381
        %v383 = vpop.f32.mrb[0].mxu0
        %384 = vmatprep.mubr.bf16.mxu0 0
        %385 = vmatmul.mubr.bf16.gmra.mrb[0].mxu0 %v263
        %v386 = vpop.f32.mrb[0].mxu0
        %v387 = vadd.f32 0.0, %v386
        %v388 = vpop.f32.mrb[0].mxu0
        %v389 = vpop.f32.mrb[0].mxu0
        %v390 = vadd.f32 0.0, %v389
        %v391 = vpop.f32.mrb[0].mxu0
        %392 = vmatprep.mubr.bf16.mxu0 0
        %393 = vmatmul.mubr.bf16.gmra.mrb[0].mxu0 %v264
        %v394 = vpop.f32.mrb[0].mxu0
        %v395 = vadd.f32 0.0, %v394
        %v396 = vpop.f32.mrb[0].mxu0
        %v397 = vpop.f32.mrb[0].mxu0
        %v398 = vadd.f32 0.0, %v397
        %v399 = vpop.f32.mrb[0].mxu0
        %400 = vmatprep.mubr.bf16.mxu0 0
        %401 = vmatmul.mubr.bf16.gmra.mrb[0].mxu0 %v265
        %v402 = vpop.f32.mrb[0].mxu0
        %v403 = vadd.f32 0.0, %v402
        %v404 = vpop.f32.mrb[0].mxu0
        %v405 = vpop.f32.mrb[0].mxu0
        %v406 = vadd.f32 0.0, %v405
        %v407 = vpop.f32.mrb[0].mxu0
        %408 = vmatprep.mubr.bf16.mxu0 0
        %409 = vmatmul.mubr.bf16.gmra.mrb[0].mxu0 %v266
        %v410 = vpop.f32.mrb[0].mxu0
        %v411 = vadd.f32 0.0, %v410
        %v412 = vpop.f32.mrb[0].mxu0
        %v413 = vpop.f32.mrb[0].mxu0
        %v414 = vadd.f32 0.0, %v413
        %v415 = vpop.f32.mrb[0].mxu0
        %416 = vmatprep.mubr.bf16.mxu0 0
        %417 = vmatmul.mubr.bf16.gmra.mrb[0].mxu0 %v267
        %v418 = vpop.f32.mrb[0].mxu0
        %v419 = vadd.f32 0.0, %v418
        %v420 = vpop.f32.mrb[0].mxu0
        %v421 = vpop.f32.mrb[0].mxu0
        %v422 = vadd.f32 0.0, %v421
        %v423 = vpop.f32.mrb[0].mxu0
        %424 = vmatprep.mubr.bf16.mxu0 0
        %425 = vmatmul.mubr.bf16.gmra.mrb[0].mxu0 %v268
        %v426 = vpop.f32.mrb[0].mxu0
        %v427 = vadd.f32 0.0, %v426
        %v428 = vpop.f32.mrb[0].mxu0
        %v429 = vpop.f32.mrb[0].mxu0
        %v430 = vadd.f32 0.0, %v429
        %v431 = vpop.f32.mrb[0].mxu0
        %432 = vdwg.mxu0
        %v433 = vld [vmem:[#allocation2] sm:$0xf]
        %v434 = vld [vmem:[#allocation2 + $0x4] sm:$0xf]
        %v435 = vld [vmem:[#allocation2 + $0x8] sm:$0xf]
        %v436 = vld [vmem:[#allocation2 + $0xc] sm:$0xf]
        %v437 = vld [vmem:[#allocation2 + $0x10] sm:$0xf]
        %v438 = vld [vmem:[#allocation2 + $0x14] sm:$0xf]
        %v439 = vld [vmem:[#allocation2 + $0x18] sm:$0xf]
        %v440 = vld [vmem:[#allocation2 + $0x1c] sm:$0xf]
        %v441 = vld [vmem:[#allocation2 + $0x20] sm:$0xf]
        %v442 = vld [vmem:[#allocation2 + $0x24] sm:$0xf]
        %v443 = vld [vmem:[#allocation2 + $0x28] sm:$0xf]
        %v444 = vld [vmem:[#allocation2 + $0x2c] sm:$0xf]
        %v445 = vld [vmem:[#allocation2 + $0x30] sm:$0xf]
        %v446 = vld [vmem:[#allocation2 + $0x34] sm:$0xf]
        %v447 = vld [vmem:[#allocation2 + $0x38] sm:$0xf]
        %v448 = vld [vmem:[#allocation2 + $0x3c] sm:$0xf]
        %v449 = vpack.c.bf16 %v374, %v371
        %v450 = vpack.c.bf16 %v382, %v379
        %v451 = vpack.c.bf16 %v390, %v387
        %v452 = vpack.c.bf16 %v398, %v395
        %v453 = vpack.c.bf16 %v406, %v403
        %v454 = vpack.c.bf16 %v414, %v411
        %v455 = vpack.c.bf16 %v422, %v419
        %v456 = vpack.c.bf16 %v430, %v427
        %s457 = scalar_lea.vmem %s3, %s18
        %v458 = vld [vmem:[%s457] sm:$0x1]
        %v460 = vlaneseq
        %v461 = vshrl.u32 %v460, 7
        %v462 = vsub.s32 0, %v461
        %v463 = vrot.slane %v458, %v462
        %v481 = vunpack.c.l.b16 %v433
        %v482 = vunpack.c.l.b16 %v434
        %v483 = vunpack.c.l.b16 %v435
        %v484 = vunpack.c.l.b16 %v436
        %v485 = vunpack.c.l.b16 %v437
        %v486 = vunpack.c.l.b16 %v438
        %v487 = vunpack.c.l.b16 %v439
        %v488 = vunpack.c.l.b16 %v440
        %v489 = vunpack.c.l.b16 %v441
        %v490 = vunpack.c.l.b16 %v442
        %v491 = vunpack.c.l.b16 %v443
        %v492 = vunpack.c.l.b16 %v444
        %v493 = vunpack.c.l.b16 %v445
        %v494 = vunpack.c.l.b16 %v446
        %v495 = vunpack.c.l.b16 %v447
        %v496 = vunpack.c.l.b16 %v448
        %v497 = vpack.c.b16 %v482, %v481
        %v498 = vpack.c.b16 %v484, %v483
        %v499 = vpack.c.b16 %v486, %v485
        %v500 = vpack.c.b16 %v488, %v487
        %v501 = vpack.c.b16 %v490, %v489
        %v502 = vpack.c.b16 %v492, %v491
        %v503 = vpack.c.b16 %v494, %v493
        %v504 = vpack.c.b16 %v496, %v495
        %513 = vmatprep.subr.bf16.mxu0 0
        %514 = vmatpush1.bf16.msra.mxu0 %v449
        %515 = vmatprep.subr.bf16.mxu0 0
        %516 = vmatpush1.bf16.msra.mxu0 %v450
        %517 = vmatprep.subr.bf16.mxu0 0
        %518 = vmatpush1.bf16.msra.mxu0 %v451
        %519 = vmatprep.subr.bf16.mxu0 0
        %520 = vmatpush1.bf16.msra.mxu0 %v452
        %521 = vmatprep.subr.bf16.mxu0 0
        %522 = vmatpush1.bf16.msra.mxu0 %v453
        %523 = vmatprep.subr.bf16.mxu0 0
        %524 = vmatpush1.bf16.msra.mxu0 %v454
        %525 = vmatprep.subr.bf16.mxu0 0
        %526 = vmatpush1.bf16.msra.mxu0 %v455
        %527 = vmatprep.subr.bf16.mxu0 0
        %528 = vmatpush1.bf16.msra.mxu0 %v456
        %529 = vmatprep.subr.bf16.mxu0 0
        %530 = vmatpush1.bf16.msra.mxu0 0
        %531 = vmatprep.subr.bf16.mxu0 0
        %532 = vmatpush1.bf16.msra.mxu0 0
        %533 = vmatprep.subr.bf16.mxu0 0
        %534 = vmatpush1.bf16.msra.mxu0 0
        %535 = vmatprep.subr.bf16.mxu0 0
        %536 = vmatpush1.bf16.msra.mxu0 0
        %537 = vmatprep.subr.bf16.mxu0 0
        %538 = vmatpush1.bf16.msra.mxu0 0
        %539 = vmatprep.subr.bf16.mxu0 0
        %540 = vmatpush1.bf16.msra.mxu0 0
        %541 = vmatprep.subr.bf16.mxu0 0
        %542 = vmatpush1.bf16.msra.mxu0 0
        %543 = vmatprep.subr.bf16.mxu0 0
        %544 = vmatpush1.bf16.msra.mxu0 0
        %545 = vmatprep.mubr.bf16.mxu0 0
        %546 = vmatmul.mubr.bf16.gmra.mrb[0].mxu0 %v497
        %v547 = vpop.f32.mrb[0].mxu0
        %v548 = vadd.f32 %v463, %v547
        %v549 = vpop.f32.mrb[0].mxu0
        %v550 = vpop.f32.mrb[0].mxu0
        %v551 = vadd.f32 %v463, %v550
        %v552 = vpop.f32.mrb[0].mxu0
        %553 = vmatprep.mubr.bf16.mxu0 0
        %554 = vmatmul.mubr.bf16.gmra.mrb[0].mxu0 %v498
        %v555 = vpop.f32.mrb[0].mxu0
        %v556 = vadd.f32 %v463, %v555
        %v557 = vpop.f32.mrb[0].mxu0
        %v558 = vpop.f32.mrb[0].mxu0
        %v559 = vadd.f32 %v463, %v558
        %v560 = vpop.f32.mrb[0].mxu0
        %561 = vmatprep.mubr.bf16.mxu0 0
        %562 = vmatmul.mubr.bf16.gmra.mrb[0].mxu0 %v499
        %v563 = vpop.f32.mrb[0].mxu0
        %v564 = vadd.f32 %v463, %v563
        %v565 = vpop.f32.mrb[0].mxu0
        %v566 = vpop.f32.mrb[0].mxu0
        %v567 = vadd.f32 %v463, %v566
        %v568 = vpop.f32.mrb[0].mxu0
        %569 = vmatprep.mubr.bf16.mxu0 0
        %570 = vmatmul.mubr.bf16.gmra.mrb[0].mxu0 %v500
        %v571 = vpop.f32.mrb[0].mxu0
        %v572 = vadd.f32 %v463, %v571
        %v573 = vpop.f32.mrb[0].mxu0
        %v574 = vpop.f32.mrb[0].mxu0
        %v575 = vadd.f32 %v463, %v574
        %v576 = vpop.f32.mrb[0].mxu0
        %577 = vmatprep.mubr.bf16.mxu0 0
        %578 = vmatmul.mubr.bf16.gmra.mrb[0].mxu0 %v501
        %v579 = vpop.f32.mrb[0].mxu0
        %v580 = vadd.f32 %v463, %v579
        %v581 = vpop.f32.mrb[0].mxu0
        %v582 = vpop.f32.mrb[0].mxu0
        %v583 = vadd.f32 %v463, %v582
        %v584 = vpop.f32.mrb[0].mxu0
        %585 = vmatprep.mubr.bf16.mxu0 0
        %586 = vmatmul.mubr.bf16.gmra.mrb[0].mxu0 %v502
        %v587 = vpop.f32.mrb[0].mxu0
        %v588 = vadd.f32 %v463, %v587
        %v589 = vpop.f32.mrb[0].mxu0
        %v590 = vpop.f32.mrb[0].mxu0
        %v591 = vadd.f32 %v463, %v590
        %v592 = vpop.f32.mrb[0].mxu0
        %593 = vmatprep.mubr.bf16.mxu0 0
        %594 = vmatmul.mubr.bf16.gmra.mrb[0].mxu0 %v503
        %v595 = vpop.f32.mrb[0].mxu0
        %v596 = vadd.f32 %v463, %v595
        %v597 = vpop.f32.mrb[0].mxu0
        %v598 = vpop.f32.mrb[0].mxu0
        %v599 = vadd.f32 %v463, %v598
        %v600 = vpop.f32.mrb[0].mxu0
        %601 = vmatprep.mubr.bf16.mxu0 0
        %602 = vmatmul.mubr.bf16.gmra.mrb[0].mxu0 %v504
        %v603 = vpop.f32.mrb[0].mxu0
        %v604 = vadd.f32 %v463, %v603
        %v605 = vpop.f32.mrb[0].mxu0
        %v606 = vpop.f32.mrb[0].mxu0
        %v607 = vadd.f32 %v463, %v606
        %v608 = vpop.f32.mrb[0].mxu0
        %609 = vdwg.mxu0
        %v610 = vmax.f32 %v548, 0.0
        %v611 = vmax.f32 %v551, 0.0
        %v612 = vmax.f32 %v556, 0.0
        %v613 = vmax.f32 %v559, 0.0
        %v614 = vmax.f32 %v564, 0.0
        %v615 = vmax.f32 %v567, 0.0
        %v616 = vmax.f32 %v572, 0.0
        %v617 = vmax.f32 %v575, 0.0
        %v618 = vmax.f32 %v580, 0.0
        %v619 = vmax.f32 %v583, 0.0
        %v620 = vmax.f32 %v588, 0.0
        %v621 = vmax.f32 %v591, 0.0
        %v622 = vmax.f32 %v596, 0.0
        %v623 = vmax.f32 %v599, 0.0
        %v624 = vmax.f32 %v604, 0.0
        %v625 = vmax.f32 %v607, 0.0
        %v626 = vmul.f32 %v610, %v610
        %v627 = vmul.f32 %v611, %v611
        %v628 = vmul.f32 %v612, %v612
        %v629 = vmul.f32 %v613, %v613
        %v630 = vmul.f32 %v614, %v614
        %v631 = vmul.f32 %v615, %v615
        %v632 = vmul.f32 %v616, %v616
        %v633 = vmul.f32 %v617, %v617
        %v634 = vmul.f32 %v618, %v618
        %v635 = vmul.f32 %v619, %v619
        %v636 = vmul.f32 %v620, %v620
        %v637 = vmul.f32 %v621, %v621
        %v638 = vmul.f32 %v622, %v622
        %v639 = vmul.f32 %v623, %v623
        %v640 = vmul.f32 %v624, %v624
        %v641 = vmul.f32 %v625, %v625
        %642 = vadd.xlane.f32.xlu0 %v626
        %v643 = vpop.xlane.xlu0 %642
        %644 = vadd.xlane.f32.xlu0 %v627
        %v645 = vpop.xlane.xlu0 %644
        %646 = vadd.xlane.f32.xlu0 %v628
        %v647 = vpop.xlane.xlu0 %646
        %648 = vadd.xlane.f32.xlu0 %v629
        %v649 = vpop.xlane.xlu0 %648
        %650 = vadd.xlane.f32.xlu0 %v630
        %v651 = vpop.xlane.xlu0 %650
        %652 = vadd.xlane.f32.xlu0 %v631
        %v653 = vpop.xlane.xlu0 %652
        %654 = vadd.xlane.f32.xlu0 %v632
        %v655 = vpop.xlane.xlu0 %654
        %656 = vadd.xlane.f32.xlu0 %v633
        %v657 = vpop.xlane.xlu0 %656
        %658 = vadd.xlane.f32.xlu0 %v634
        %v659 = vpop.xlane.xlu0 %658
        %660 = vadd.xlane.f32.xlu0 %v635
        %v661 = vpop.xlane.xlu0 %660
        %662 = vadd.xlane.f32.xlu0 %v636
        %v663 = vpop.xlane.xlu0 %662
        %664 = vadd.xlane.f32.xlu0 %v637
        %v665 = vpop.xlane.xlu0 %664
        %666 = vadd.xlane.f32.xlu0 %v638
        %v667 = vpop.xlane.xlu0 %666
        %668 = vadd.xlane.f32.xlu0 %v639
        %v669 = vpop.xlane.xlu0 %668
        %670 = vadd.xlane.f32.xlu0 %v640
        %v671 = vpop.xlane.xlu0 %670
        %672 = vadd.xlane.f32.xlu0 %v641
        %v673 = vpop.xlane.xlu0 %672
        %v674 = vmax.f32 %v643, 1e-24
        %v675 = vmax.f32 %v645, 1e-24
        %v676 = vmax.f32 %v647, 1e-24
        %v677 = vmax.f32 %v649, 1e-24
        %v678 = vmax.f32 %v651, 1e-24
        %v679 = vmax.f32 %v653, 1e-24
        %v680 = vmax.f32 %v655, 1e-24
        %v681 = vmax.f32 %v657, 1e-24
        %v682 = vmax.f32 %v659, 1e-24
        %v683 = vmax.f32 %v661, 1e-24
        %v684 = vmax.f32 %v663, 1e-24
        %v685 = vmax.f32 %v665, 1e-24
        %v686 = vmax.f32 %v667, 1e-24
        %v687 = vmax.f32 %v669, 1e-24
        %v688 = vmax.f32 %v671, 1e-24
        %v689 = vmax.f32 %v673, 1e-24
        %v690 = vrsqrt.pop %v674
        %v691 = vrsqrt.pop %v675
        %v692 = vrsqrt.pop %v676
        %v693 = vrsqrt.pop %v677
        %v694 = vrsqrt.pop %v678
        %v695 = vrsqrt.pop %v679
        %v696 = vrsqrt.pop %v680
        %v697 = vrsqrt.pop %v681
        %v698 = vrsqrt.pop %v682
        %v699 = vrsqrt.pop %v683
        %v700 = vrsqrt.pop %v684
        %v701 = vrsqrt.pop %v685
        %v702 = vrsqrt.pop %v686
        %v703 = vrsqrt.pop %v687
        %v704 = vrsqrt.pop %v688
        %v705 = vrsqrt.pop %v689
        %v706 = vmul.f32 %v610, %v690
        %v707 = vmul.f32 %v611, %v691
        %v708 = vmul.f32 %v612, %v692
        %v709 = vmul.f32 %v613, %v693
        %v710 = vmul.f32 %v614, %v694
        %v711 = vmul.f32 %v615, %v695
        %v712 = vmul.f32 %v616, %v696
        %v713 = vmul.f32 %v617, %v697
        %v714 = vmul.f32 %v618, %v698
        %v715 = vmul.f32 %v619, %v699
        %v716 = vmul.f32 %v620, %v700
        %v717 = vmul.f32 %v621, %v701
        %v718 = vmul.f32 %v622, %v702
        %v719 = vmul.f32 %v623, %v703
        %v720 = vmul.f32 %v624, %v704
        %v721 = vmul.f32 %v625, %v705
        %722 = vst [vmem:[#allocation8] sm:$0xff] %v706
        %723 = vst [vmem:[#allocation8 + $0x8] sm:$0xff] %v707
        %724 = vst [vmem:[#allocation8 + $0x10] sm:$0xff] %v708
        %725 = vst [vmem:[#allocation8 + $0x18] sm:$0xff] %v709
        %726 = vst [vmem:[#allocation8 + $0x20] sm:$0xff] %v710
        %727 = vst [vmem:[#allocation8 + $0x28] sm:$0xff] %v711
        %728 = vst [vmem:[#allocation8 + $0x30] sm:$0xff] %v712
        %729 = vst [vmem:[#allocation8 + $0x38] sm:$0xff] %v713
        %730 = vst [vmem:[#allocation8 + $0x40] sm:$0xff] %v714
        %731 = vst [vmem:[#allocation8 + $0x48] sm:$0xff] %v715
        %732 = vst [vmem:[#allocation8 + $0x50] sm:$0xff] %v716
        %733 = vst [vmem:[#allocation8 + $0x58] sm:$0xff] %v717
        %734 = vst [vmem:[#allocation8 + $0x60] sm:$0xff] %v718
        %735 = vst [vmem:[#allocation8 + $0x68] sm:$0xff] %v719
        %736 = vst [vmem:[#allocation8 + $0x70] sm:$0xff] %v720
        %737 = vst [vmem:[#allocation8 + $0x78] sm:$0xff] %v721
        %p738 = scmp.eq.s32.totalorder %s18, 2
        // Predicated region
        $region53: #{tpu_custom_call.1} parent=35 // pred_check
          %p739 = pneg %p738
        $region54: #{tpu_custom_call.1} parent=35 // pred_check_branch
          %741 = sbr.rel (%p739) target = $region56
        $region55: #{tpu_custom_call.1} parent=35 // pred_region
          %v742 = vmul.f32 %v706, %v706
          %v743 = vmul.f32 %v707, %v707
          %v744 = vmul.f32 %v708, %v708
          %v745 = vmul.f32 %v709, %v709
          %v746 = vmul.f32 %v710, %v710
          %v747 = vmul.f32 %v711, %v711
          %v748 = vmul.f32 %v712, %v712
          %v749 = vmul.f32 %v713, %v713
          %v750 = vmul.f32 %v714, %v714
          %v751 = vmul.f32 %v715, %v715
          %v752 = vmul.f32 %v716, %v716
          %v753 = vmul.f32 %v717, %v717
          %v754 = vmul.f32 %v718, %v718
          %v755 = vmul.f32 %v719, %v719
          %v756 = vmul.f32 %v720, %v720
          %v757 = vmul.f32 %v721, %v721
          %758 = vadd.xlane.f32.xlu0 %v742
          %v759 = vpop.xlane.xlu0 %758
          %760 = vadd.xlane.f32.xlu0 %v743
          %v761 = vpop.xlane.xlu0 %760
          %762 = vadd.xlane.f32.xlu0 %v744
          %v763 = vpop.xlane.xlu0 %762
          %764 = vadd.xlane.f32.xlu0 %v745
          %v765 = vpop.xlane.xlu0 %764
          %766 = vadd.xlane.f32.xlu0 %v746
          %v767 = vpop.xlane.xlu0 %766
          %768 = vadd.xlane.f32.xlu0 %v747
          %v769 = vpop.xlane.xlu0 %768
          %770 = vadd.xlane.f32.xlu0 %v748
          %v771 = vpop.xlane.xlu0 %770
          %772 = vadd.xlane.f32.xlu0 %v749
          %v773 = vpop.xlane.xlu0 %772
          %774 = vadd.xlane.f32.xlu0 %v750
          %v775 = vpop.xlane.xlu0 %774
          %776 = vadd.xlane.f32.xlu0 %v751
          %v777 = vpop.xlane.xlu0 %776
          %778 = vadd.xlane.f32.xlu0 %v752
          %v779 = vpop.xlane.xlu0 %778
          %780 = vadd.xlane.f32.xlu0 %v753
          %v781 = vpop.xlane.xlu0 %780
          %782 = vadd.xlane.f32.xlu0 %v754
          %v783 = vpop.xlane.xlu0 %782
          %784 = vadd.xlane.f32.xlu0 %v755
          %v785 = vpop.xlane.xlu0 %784
          %786 = vadd.xlane.f32.xlu0 %v756
          %v787 = vpop.xlane.xlu0 %786
          %788 = vadd.xlane.f32.xlu0 %v757
          %v789 = vpop.xlane.xlu0 %788
          %v790 = vmax.f32 %v759, 1e-24
          %v791 = vmax.f32 %v761, 1e-24
          %v792 = vmax.f32 %v763, 1e-24
          %v793 = vmax.f32 %v765, 1e-24
          %v794 = vmax.f32 %v767, 1e-24
          %v795 = vmax.f32 %v769, 1e-24
          %v796 = vmax.f32 %v771, 1e-24
          %v797 = vmax.f32 %v773, 1e-24
          %v798 = vmax.f32 %v775, 1e-24
          %v799 = vmax.f32 %v777, 1e-24
          %v800 = vmax.f32 %v779, 1e-24
          %v801 = vmax.f32 %v781, 1e-24
          %v802 = vmax.f32 %v783, 1e-24
          %v803 = vmax.f32 %v785, 1e-24
          %v804 = vmax.f32 %v787, 1e-24
          %v805 = vmax.f32 %v789, 1e-24
          %v806 = vrsqrt.pop %v790
          %v807 = vrsqrt.pop %v791
          %v808 = vrsqrt.pop %v792
          %v809 = vrsqrt.pop %v793
          %v810 = vrsqrt.pop %v794
          %v811 = vrsqrt.pop %v795
          %v812 = vrsqrt.pop %v796
          %v813 = vrsqrt.pop %v797
          %v814 = vrsqrt.pop %v798
          %v815 = vrsqrt.pop %v799
          %v816 = vrsqrt.pop %v800
          %v817 = vrsqrt.pop %v801
          %v818 = vrsqrt.pop %v802
          %v819 = vrsqrt.pop %v803
          %v820 = vrsqrt.pop %v804
          %v821 = vrsqrt.pop %v805
          %v822 = vmul.f32 %v706, %v806
          %v823 = vmul.f32 %v707, %v807
          %v824 = vmul.f32 %v708, %v808
          %v825 = vmul.f32 %v709, %v809
          %v826 = vmul.f32 %v710, %v810
          %v827 = vmul.f32 %v711, %v811
          %v828 = vmul.f32 %v712, %v812
          %v829 = vmul.f32 %v713, %v813
          %v830 = vmul.f32 %v714, %v814
          %v831 = vmul.f32 %v715, %v815
          %v832 = vmul.f32 %v716, %v816
          %v833 = vmul.f32 %v717, %v817
          %v834 = vmul.f32 %v718, %v818
          %v835 = vmul.f32 %v719, %v819
          %v836 = vmul.f32 %v720, %v820
          %v837 = vmul.f32 %v721, %v821
          %838 = vst [vmem:[#allocation8] sm:$0xff] %v822
          %839 = vst [vmem:[#allocation8 + $0x8] sm:$0xff] %v823
          %840 = vst [vmem:[#allocation8 + $0x10] sm:$0xff] %v824
          %841 = vst [vmem:[#allocation8 + $0x18] sm:$0xff] %v825
          %842 = vst [vmem:[#allocation8 + $0x20] sm:$0xff] %v826
          %843 = vst [vmem:[#allocation8 + $0x28] sm:$0xff] %v827
          %844 = vst [vmem:[#allocation8 + $0x30] sm:$0xff] %v828
          %845 = vst [vmem:[#allocation8 + $0x38] sm:$0xff] %v829
          %846 = vst [vmem:[#allocation8 + $0x40] sm:$0xff] %v830
          %847 = vst [vmem:[#allocation8 + $0x48] sm:$0xff] %v831
          %848 = vst [vmem:[#allocation8 + $0x50] sm:$0xff] %v832
          %849 = vst [vmem:[#allocation8 + $0x58] sm:$0xff] %v833
          %850 = vst [vmem:[#allocation8 + $0x60] sm:$0xff] %v834
          %851 = vst [vmem:[#allocation8 + $0x68] sm:$0xff] %v835
          %852 = vst [vmem:[#allocation8 + $0x70] sm:$0xff] %v836
          %853 = vst [vmem:[#allocation8 + $0x78] sm:$0xff] %v837
        $region56: #{tpu_custom_call.1} parent=35 // pred_fallthru
          _
        // Predicated region
        $region57: #{tpu_custom_call.1} parent=35 // pred_check
          %p854 = pneg %p115
        $region58: #{tpu_custom_call.1} parent=35 // pred_check_branch
          %856 = sbr.rel (%p854) target = $region60
        $region59: #{tpu_custom_call.1} parent=35 // pred_region
          %s858 = ssub.s32 2048, 2048
          %859 = vsyncadd [#allocation4], %s858
          %s860 = sshll.u32 [#allocation8], 4
          %s861 = int_to_ptr.vmem [resolvable:$true] %s860
          %866 = dma.vmem_to_hbm [thread:$0]  %s861, 2048, %s4, [#allocation4], 128, 128, 8
        $region60: #{tpu_custom_call.1} parent=35 // pred_fallthru
          _
        // Predicated region
        $region61: #{tpu_custom_call.1} parent=35 // pred_check
          %p867 = pneg %p115
        $region62: #{tpu_custom_call.1} parent=35 // pred_check_branch
          %869 = sbr.rel (%p867) target = $region64
        $region63: #{tpu_custom_call.1} parent=35 // pred_region
          %870 = dma.done [#allocation4], 2048
        $region64: #{tpu_custom_call.1} parent=35 // pred_fallthru
          _
      $region36: #{tpu_custom_call.1} parent=5 // pred_fallthru
        _
      %p871 = scmp.le.s32.totalorder 2, %s13
      // Predicated region
      $region65: #{tpu_custom_call.1} parent=5 // pred_check
        %p872 = pneg %p871
      $region66: #{tpu_custom_call.1} parent=5 // pred_check_branch
        %874 = sbr.rel (%p872) target = $region68
      $region67: #{tpu_custom_call.1} parent=5 // pred_region
        %s875 = ssub.s32 %s13, 2
      $region68: #{tpu_custom_call.1} parent=5 // pred_fallthru
        _
    $region6: #{tpu_custom_call.1} parent=1 // loop_footer
      %s17 = sadd.s32 1, %s13
    $region7: #{tpu_custom_call.1} parent=1 // loop_footer_branch
      %12 = sbr.rel target = $region3
    $region8: #{tpu_custom_call.1} parent=1 // loop_exit
      _
    %876 = vsyncpa [#allocation3], 1
    %s877 = scalar_lea.sflag [#allocation3], 1
    %878 = vsyncpa %s877, 1
    %879 = vsyncpa [#allocation6], 1
    %880 = vsyncpa [#allocation4], 1
    %s881 = scalar_lea.sflag [#allocation4], 1
    %882 = vsyncpa %s881, 1

</llo_original>
